<compile_context>
chip_gen: v5e
topology: v5e:2x2
jax: 0.10.0
libtpu: 0.0.40
codegen_flags: <defaults>
</compile_context>

<pallas_src>
import jax
import jax.numpy as jnp
from jax import lax
from jax.experimental import pallas as pl
from jax.experimental.pallas import tpu as pltpu


def _upsample_conv_kernel(weff_ref, b_ref, xp_ref, o_ref):
    # weff_ref: (2, 2, 4*Cin, Cout)   bf16, index along K is (p*2+q)*Cin + ci
    # b_ref:    (1, Cout)             f32
    # xp_ref:   (1, H+2, W+2, Cin)    bf16, zero-padded, channels on lanes
    # o_ref:    (1, TH, 2, 2, W, Cout) f32, TH output row-pairs, all parities
    th = o_ref.shape[1]
    w_out = o_ref.shape[4]
    c_out = o_ref.shape[5]

    j = pl.program_id(1)
    t0 = pl.multiple_of(j * th, th)

    # Hoist the 9 distinct shifted windows once per grid step: (TH, W, Cin).
    win = [[xp_ref[0, pl.ds(t0 + r, th), pl.ds(s, w_out), :] for s in range(3)]
           for r in range(3)]

    bias = b_ref[...].astype(jnp.float32)            # (1, Cout), broadcasts

    for ry in range(2):
        for rx in range(2):
            # Fold the 2x2 upsample taps into the contraction: K = 4*Cin.
            slab = jnp.concatenate(
                [win[ry + p][rx + q] for p in range(2) for q in range(2)],
                axis=-1)                             # (TH, W, 4*Cin)
            slab = slab.reshape(th * w_out, 4 * xp_ref.shape[3])
            acc = jnp.dot(slab, weff_ref[ry, rx],
                          preferred_element_type=jnp.float32)  # (TH*W, Cout)
            out = acc.reshape(th, w_out, c_out) + bias
            o_ref[0, :, ry, rx, :, :] = out.astype(o_ref.dtype)


def _make_effective_weights(w):
    # w: (Cout, Cin, 3, 3) in PyTorch OIHW order.
    # Tap-index sets induced by nearest 2x upsample followed by a 3x3 conv:
    #   parity 0 taps rows {y-1} and {y,y} ; parity 1 taps rows {y,y} and {y+1}
    sets = [[(0,), (1, 2)], [(0, 1), (2,)]]
    cout, cin = w.shape[0], w.shape[1]
    parities = []
    for ry in range(2):
        for rx in range(2):
            parts = []
            for p in range(2):
                for q in range(2):
                    wk = sum(w[:, :, ky, kx]
                             for ky in sets[ry][p] for kx in sets[rx][q])
                    parts.append(wk.T)                       # (Cin, Cout)
            parities.append(jnp.concatenate(parts, axis=0))  # (4*Cin, Cout)
    return jnp.stack(parities).reshape(2, 2, 4 * cin, cout)


def upsample_conv(x, w, b, *, row_block=8):
    """x: (N, C, H, W) f32, w: (C, C, 3, 3) OIHW, b: (C,) -> (N, C, 2H, 2W)."""
    n, c, h, wd = x.shape

    th = 1
    for cand in (row_block, 8, 4, 2, 1):
        if cand and h % cand == 0:
            th = cand
            break

    weff = _make_effective_weights(w.astype(jnp.float32)).astype(jnp.bfloat16)
    bias = b.reshape(1, c).astype(jnp.float32)

    # One zero-pad covers both the upsample border and the conv padding=1.
    xp = jnp.pad(x, ((0, 0), (0, 0), (1, 1), (1, 1)))
    # Channels on lanes, width on sublanes.
    xp = jnp.transpose(xp, (0, 2, 3, 1)).astype(jnp.bfloat16)  # (N, H+2, W+2, C)

    out6 = pl.pallas_call(
        _upsample_conv_kernel,
        out_shape=jax.ShapeDtypeStruct((n, h, 2, 2, wd, c), jnp.float32),
        grid_spec=pltpu.PrefetchScalarGridSpec(
            num_scalar_prefetch=0,
            grid=(n, h // th),
            in_specs=[
                pl.BlockSpec((2, 2, 4 * c, c), lambda i, j: (0, 0, 0, 0)),
                pl.BlockSpec((1, c), lambda i, j: (0, 0)),
                pl.BlockSpec((1, h + 2, wd + 2, c), lambda i, j: (i, 0, 0, 0)),
            ],
            out_specs=pl.BlockSpec((1, th, 2, 2, wd, c),
                                   lambda i, j: (i, j, 0, 0, 0, 0)),
        ),
        compiler_params=pltpu.CompilerParams(
            dimension_semantics=("parallel", "parallel"),
            vmem_limit_bytes=64 * 1024 * 1024),
    )(weff, bias, xp)

    # (N, H, ry, rx, W, C) -> (N, C, 2H, 2W): out[n, c, 2y+ry, 2x+rx]
    out = jnp.transpose(out6, (0, 5, 1, 2, 4, 3)).reshape(n, c, 2 * h, 2 * wd)
    return out


def _reference(x, w, b):
    up = jnp.repeat(jnp.repeat(x, 2, axis=2), 2, axis=3)
    out = lax.conv_general_dilated(
        up, w, window_strides=(1, 1), padding=((1, 1), (1, 1)),
        dimension_numbers=("NCHW", "OIHW", "NCHW"))
    return out + b.reshape(1, -1, 1, 1)


if __name__ == "__main__":
    N, C, H, W = 2, 4, 16, 16
    key = jax.random.PRNGKey(0)
    kx, kw, kb = jax.random.split(key, 3)

    x = jax.random.normal(kx, (N, C, H, W), dtype=jnp.float32)
    # deterministic synthetic parameters (Conv2d(C, C, 3) shapes)
    w = 0.1 * jax.random.normal(kw, (C, C, 3, 3), dtype=jnp.float32)
    b = 0.1 * jax.random.normal(kb, (C,), dtype=jnp.float32)

    out = jax.block_until_ready(upsample_conv(x, w, b))
    ref = jax.block_until_ready(_reference(x, w, b))

    assert out.shape == (N, C, 2 * H, 2 * W), out.shape
    err = float(jnp.max(jnp.abs(out - ref)))
    # bf16 weights/activations (f32 accumulation) -> loosened tolerance.
    assert err < 5e-2, err
    print("KERNEL_OK")
</pallas_src>

<mosaic_0001>
module attributes {stable_mosaic.version = 11 : i64} {
  func.func @_upsample_conv_kernel(%arg0: i32, %arg1: i32, %arg2: memref<2x2x16x4xbf16, #tpu.memory_space<vmem>>, %arg3: memref<1x4xf32, #tpu.memory_space<vmem>>, %arg4: memref<1x18x18x4xbf16, #tpu.memory_space<vmem>>, %arg5: memref<1x8x2x2x16x4xf32, #tpu.memory_space<vmem>>) attributes {dimension_semantics = [#tpu.dimension_semantics<parallel>, #tpu.dimension_semantics<parallel>], iteration_bounds = array<i64: 2, 2>, scalar_prefetch = 0 : i64, scratch_operands = 0 : i64, tpu.core_type = #tpu.core_type<tc>, window_params = [{pipeline_mode = #tpu.pipeline_mode<synchronous>, transform_indices = @transform_0, window_bounds = array<i64: 2, 2, 16, 4>}, {pipeline_mode = #tpu.pipeline_mode<synchronous>, transform_indices = @transform_1, window_bounds = array<i64: 1, 4>}, {transform_indices = @transform_2, window_bounds = array<i64: 1, 18, 18, 4>}, {transform_indices = @transform_3, window_bounds = array<i64: 1, 8, 2, 2, 16, 4>}]} {
    %c8_i32 = arith.constant 8 : i32
    %0 = arith.muli %arg1, %c8_i32 : i32
    %1 = tpu.assume_multiple %0, 8 : i32
    %c0_i32 = arith.constant 0 : i32
    %2 = arith.addi %1, %c0_i32 : i32
    %c0 = arith.constant 0 : index
    %3 = arith.index_cast %2 : i32 to index
    %c0_0 = arith.constant 0 : index
    %c0_1 = arith.constant 0 : index
    %4 = vector.load %arg4[%c0, %3, %c0_0, %c0_1] : memref<1x18x18x4xbf16, #tpu.memory_space<vmem>>, vector<1x8x16x4xbf16>
    %5 = vector.shape_cast %4 : vector<1x8x16x4xbf16> to vector<8x16x4xbf16>
    %c0_i32_2 = arith.constant 0 : i32
    %6 = arith.addi %1, %c0_i32_2 : i32
    %c0_3 = arith.constant 0 : index
    %7 = arith.index_cast %6 : i32 to index
    %c1 = arith.constant 1 : index
    %c0_4 = arith.constant 0 : index
    %8 = vector.load %arg4[%c0_3, %7, %c1, %c0_4] : memref<1x18x18x4xbf16, #tpu.memory_space<vmem>>, vector<1x8x16x4xbf16>
    %9 = vector.shape_cast %8 : vector<1x8x16x4xbf16> to vector<8x16x4xbf16>
    %c0_i32_5 = arith.constant 0 : i32
    %10 = arith.addi %1, %c0_i32_5 : i32
    %c0_6 = arith.constant 0 : index
    %11 = arith.index_cast %10 : i32 to index
    %c2 = arith.constant 2 : index
    %c0_7 = arith.constant 0 : index
    %12 = vector.load %arg4[%c0_6, %11, %c2, %c0_7] : memref<1x18x18x4xbf16, #tpu.memory_space<vmem>>, vector<1x8x16x4xbf16>
    %13 = vector.shape_cast %12 : vector<1x8x16x4xbf16> to vector<8x16x4xbf16>
    %c1_i32 = arith.constant 1 : i32
    %14 = arith.addi %1, %c1_i32 : i32
    %c0_8 = arith.constant 0 : index
    %15 = arith.index_cast %14 : i32 to index
    %c0_9 = arith.constant 0 : index
    %c0_10 = arith.constant 0 : index
    %16 = vector.load %arg4[%c0_8, %15, %c0_9, %c0_10] : memref<1x18x18x4xbf16, #tpu.memory_space<vmem>>, vector<1x8x16x4xbf16>
    %17 = vector.shape_cast %16 : vector<1x8x16x4xbf16> to vector<8x16x4xbf16>
    %c1_i32_11 = arith.constant 1 : i32
    %18 = arith.addi %1, %c1_i32_11 : i32
    %c0_12 = arith.constant 0 : index
    %19 = arith.index_cast %18 : i32 to index
    %c1_13 = arith.constant 1 : index
    %c0_14 = arith.constant 0 : index
    %20 = vector.load %arg4[%c0_12, %19, %c1_13, %c0_14] : memref<1x18x18x4xbf16, #tpu.memory_space<vmem>>, vector<1x8x16x4xbf16>
    %21 = vector.shape_cast %20 : vector<1x8x16x4xbf16> to vector<8x16x4xbf16>
    %c1_i32_15 = arith.constant 1 : i32
    %22 = arith.addi %1, %c1_i32_15 : i32
    %c0_16 = arith.constant 0 : index
    %23 = arith.index_cast %22 : i32 to index
    %c2_17 = arith.constant 2 : index
    %c0_18 = arith.constant 0 : index
    %24 = vector.load %arg4[%c0_16, %23, %c2_17, %c0_18] : memref<1x18x18x4xbf16, #tpu.memory_space<vmem>>, vector<1x8x16x4xbf16>
    %25 = vector.shape_cast %24 : vector<1x8x16x4xbf16> to vector<8x16x4xbf16>
    %c2_i32 = arith.constant 2 : i32
    %26 = arith.addi %1, %c2_i32 : i32
    %c0_19 = arith.constant 0 : index
    %27 = arith.index_cast %26 : i32 to index
    %c0_20 = arith.constant 0 : index
    %c0_21 = arith.constant 0 : index
    %28 = vector.load %arg4[%c0_19, %27, %c0_20, %c0_21] : memref<1x18x18x4xbf16, #tpu.memory_space<vmem>>, vector<1x8x16x4xbf16>
    %29 = vector.shape_cast %28 : vector<1x8x16x4xbf16> to vector<8x16x4xbf16>
    %c2_i32_22 = arith.constant 2 : i32
    %30 = arith.addi %1, %c2_i32_22 : i32
    %c0_23 = arith.constant 0 : index
    %31 = arith.index_cast %30 : i32 to index
    %c1_24 = arith.constant 1 : index
    %c0_25 = arith.constant 0 : index
    %32 = vector.load %arg4[%c0_23, %31, %c1_24, %c0_25] : memref<1x18x18x4xbf16, #tpu.memory_space<vmem>>, vector<1x8x16x4xbf16>
    %33 = vector.shape_cast %32 : vector<1x8x16x4xbf16> to vector<8x16x4xbf16>
    %c2_i32_26 = arith.constant 2 : i32
    %34 = arith.addi %1, %c2_i32_26 : i32
    %c0_27 = arith.constant 0 : index
    %35 = arith.index_cast %34 : i32 to index
    %c2_28 = arith.constant 2 : index
    %c0_29 = arith.constant 0 : index
    %36 = vector.load %arg4[%c0_27, %35, %c2_28, %c0_29] : memref<1x18x18x4xbf16, #tpu.memory_space<vmem>>, vector<1x8x16x4xbf16>
    %37 = vector.shape_cast %36 : vector<1x8x16x4xbf16> to vector<8x16x4xbf16>
    %c0_30 = arith.constant 0 : index
    %c0_31 = arith.constant 0 : index
    %38 = vector.load %arg3[%c0_30, %c0_31] : memref<1x4xf32, #tpu.memory_space<vmem>>, vector<1x4xf32>
    %39 = tpu.concatenate %5, %9, %17, %21 in 2 : vector<8x16x4xbf16>, vector<8x16x4xbf16>, vector<8x16x4xbf16>, vector<8x16x4xbf16> -> vector<8x16x16xbf16>
    %40 = vector.shape_cast %39 : vector<8x16x16xbf16> to vector<128x16xbf16>
    %c0_32 = arith.constant 0 : index
    %c0_33 = arith.constant 0 : index
    %c0_34 = arith.constant 0 : index
    %c0_35 = arith.constant 0 : index
    %41 = vector.load %arg2[%c0_32, %c0_33, %c0_34, %c0_35] : memref<2x2x16x4xbf16, #tpu.memory_space<vmem>>, vector<1x1x16x4xbf16>
    %42 = vector.shape_cast %41 : vector<1x1x16x4xbf16> to vector<16x4xbf16>
    %cst = arith.constant dense<0.000000e+00> : vector<128x4xf32>
    %43 = tpu.matmul %40, %42, %cst {dimension_numbers = #tpu.dot_dimension_numbers<[1], [0], [0], [1], [0, 0, 1, 1], [], []>} : vector<128x16xbf16>, vector<16x4xbf16>, vector<128x4xf32> -> vector<128x4xf32>
    %44 = vector.shape_cast %43 : vector<128x4xf32> to vector<8x16x4xf32>
    %45 = vector.shape_cast %38 : vector<1x4xf32> to vector<1x1x4xf32>
    %46 = vector.broadcast %45 : vector<1x1x4xf32> to vector<8x16x4xf32>
    %47 = arith.addf %44, %46 : vector<8x16x4xf32>
    %c0_36 = arith.constant 0 : index
    %c0_37 = arith.constant 0 : index
    %c0_38 = arith.constant 0 : index
    %c0_39 = arith.constant 0 : index
    %c0_40 = arith.constant 0 : index
    %c0_41 = arith.constant 0 : index
    %48 = vector.load %arg5[%c0_36, %c0_37, %c0_38, %c0_39, %c0_40, %c0_41] : memref<1x8x2x2x16x4xf32, #tpu.memory_space<vmem>>, vector<1x8x1x1x16x4xf32>
    %49 = vector.shape_cast %48 : vector<1x8x1x1x16x4xf32> to vector<8x16x4xf32>
    %50 = vector.shape_cast %47 : vector<8x16x4xf32> to vector<1x8x1x1x16x4xf32>
    tpu.vector_store %arg5[%c0_36, %c0_37, %c0_38, %c0_39, %c0_40, %c0_41], %50 {strides = array<i32>} : memref<1x8x2x2x16x4xf32, #tpu.memory_space<vmem>>, vector<1x8x1x1x16x4xf32>,
    %51 = tpu.concatenate %9, %13, %21, %25 in 2 : vector<8x16x4xbf16>, vector<8x16x4xbf16>, vector<8x16x4xbf16>, vector<8x16x4xbf16> -> vector<8x16x16xbf16>
    %52 = vector.shape_cast %51 : vector<8x16x16xbf16> to vector<128x16xbf16>
    %c0_42 = arith.constant 0 : index
    %c1_43 = arith.constant 1 : index
    %c0_44 = arith.constant 0 : index
    %c0_45 = arith.constant 0 : index
    %53 = vector.load %arg2[%c0_42, %c1_43, %c0_44, %c0_45] : memref<2x2x16x4xbf16, #tpu.memory_space<vmem>>, vector<1x1x16x4xbf16>
    %54 = vector.shape_cast %53 : vector<1x1x16x4xbf16> to vector<16x4xbf16>
    %cst_46 = arith.constant dense<0.000000e+00> : vector<128x4xf32>
    %55 = tpu.matmul %52, %54, %cst_46 {dimension_numbers = #tpu.dot_dimension_numbers<[1], [0], [0], [1], [0, 0, 1, 1], [], []>} : vector<128x16xbf16>, vector<16x4xbf16>, vector<128x4xf32> -> vector<128x4xf32>
    %56 = vector.shape_cast %55 : vector<128x4xf32> to vector<8x16x4xf32>
    %57 = vector.shape_cast %38 : vector<1x4xf32> to vector<1x1x4xf32>
    %58 = vector.broadcast %57 : vector<1x1x4xf32> to vector<8x16x4xf32>
    %59 = arith.addf %56, %58 : vector<8x16x4xf32>
    %c0_47 = arith.constant 0 : index
    %c0_48 = arith.constant 0 : index
    %c0_49 = arith.constant 0 : index
    %c1_50 = arith.constant 1 : index
    %c0_51 = arith.constant 0 : index
    %c0_52 = arith.constant 0 : index
    %60 = vector.load %arg5[%c0_47, %c0_48, %c0_49, %c1_50, %c0_51, %c0_52] : memref<1x8x2x2x16x4xf32, #tpu.memory_space<vmem>>, vector<1x8x1x1x16x4xf32>
    %61 = vector.shape_cast %60 : vector<1x8x1x1x16x4xf32> to vector<8x16x4xf32>
    %62 = vector.shape_cast %59 : vector<8x16x4xf32> to vector<1x8x1x1x16x4xf32>
    tpu.vector_store %arg5[%c0_47, %c0_48, %c0_49, %c1_50, %c0_51, %c0_52], %62 {strides = array<i32>} : memref<1x8x2x2x16x4xf32, #tpu.memory_space<vmem>>, vector<1x8x1x1x16x4xf32>,
    %63 = tpu.concatenate %17, %21, %29, %33 in 2 : vector<8x16x4xbf16>, vector<8x16x4xbf16>, vector<8x16x4xbf16>, vector<8x16x4xbf16> -> vector<8x16x16xbf16>
    %64 = vector.shape_cast %63 : vector<8x16x16xbf16> to vector<128x16xbf16>
    %c1_53 = arith.constant 1 : index
    %c0_54 = arith.constant 0 : index
    %c0_55 = arith.constant 0 : index
    %c0_56 = arith.constant 0 : index
    %65 = vector.load %arg2[%c1_53, %c0_54, %c0_55, %c0_56] : memref<2x2x16x4xbf16, #tpu.memory_space<vmem>>, vector<1x1x16x4xbf16>
    %66 = vector.shape_cast %65 : vector<1x1x16x4xbf16> to vector<16x4xbf16>
    %cst_57 = arith.constant dense<0.000000e+00> : vector<128x4xf32>
    %67 = tpu.matmul %64, %66, %cst_57 {dimension_numbers = #tpu.dot_dimension_numbers<[1], [0], [0], [1], [0, 0, 1, 1], [], []>} : vector<128x16xbf16>, vector<16x4xbf16>, vector<128x4xf32> -> vector<128x4xf32>
    %68 = vector.shape_cast %67 : vector<128x4xf32> to vector<8x16x4xf32>
    %69 = vector.shape_cast %38 : vector<1x4xf32> to vector<1x1x4xf32>
    %70 = vector.broadcast %69 : vector<1x1x4xf32> to vector<8x16x4xf32>
    %71 = arith.addf %68, %70 : vector<8x16x4xf32>
    %c0_58 = arith.constant 0 : index
    %c0_59 = arith.constant 0 : index
    %c1_60 = arith.constant 1 : index
    %c0_61 = arith.constant 0 : index
    %c0_62 = arith.constant 0 : index
    %c0_63 = arith.constant 0 : index
    %72 = vector.load %arg5[%c0_58, %c0_59, %c1_60, %c0_61, %c0_62, %c0_63] : memref<1x8x2x2x16x4xf32, #tpu.memory_space<vmem>>, vector<1x8x1x1x16x4xf32>
    %73 = vector.shape_cast %72 : vector<1x8x1x1x16x4xf32> to vector<8x16x4xf32>
    %74 = vector.shape_cast %71 : vector<8x16x4xf32> to vector<1x8x1x1x16x4xf32>
    tpu.vector_store %arg5[%c0_58, %c0_59, %c1_60, %c0_61, %c0_62, %c0_63], %74 {strides = array<i32>} : memref<1x8x2x2x16x4xf32, #tpu.memory_space<vmem>>, vector<1x8x1x1x16x4xf32>,
    %75 = tpu.concatenate %21, %25, %33, %37 in 2 : vector<8x16x4xbf16>, vector<8x16x4xbf16>, vector<8x16x4xbf16>, vector<8x16x4xbf16> -> vector<8x16x16xbf16>
    %76 = vector.shape_cast %75 : vector<8x16x16xbf16> to vector<128x16xbf16>
    %c1_64 = arith.constant 1 : index
    %c1_65 = arith.constant 1 : index
    %c0_66 = arith.constant 0 : index
    %c0_67 = arith.constant 0 : index
    %77 = vector.load %arg2[%c1_64, %c1_65, %c0_66, %c0_67] : memref<2x2x16x4xbf16, #tpu.memory_space<vmem>>, vector<1x1x16x4xbf16>
    %78 = vector.shape_cast %77 : vector<1x1x16x4xbf16> to vector<16x4xbf16>
    %cst_68 = arith.constant dense<0.000000e+00> : vector<128x4xf32>
    %79 = tpu.matmul %76, %78, %cst_68 {dimension_numbers = #tpu.dot_dimension_numbers<[1], [0], [0], [1], [0, 0, 1, 1], [], []>} : vector<128x16xbf16>, vector<16x4xbf16>, vector<128x4xf32> -> vector<128x4xf32>
    %80 = vector.shape_cast %79 : vector<128x4xf32> to vector<8x16x4xf32>
    %81 = vector.shape_cast %38 : vector<1x4xf32> to vector<1x1x4xf32>
    %82 = vector.broadcast %81 : vector<1x1x4xf32> to vector<8x16x4xf32>
    %83 = arith.addf %80, %82 : vector<8x16x4xf32>
    %c0_69 = arith.constant 0 : index
    %c0_70 = arith.constant 0 : index
    %c1_71 = arith.constant 1 : index
    %c1_72 = arith.constant 1 : index
    %c0_73 = arith.constant 0 : index
    %c0_74 = arith.constant 0 : index
    %84 = vector.load %arg5[%c0_69, %c0_70, %c1_71, %c1_72, %c0_73, %c0_74] : memref<1x8x2x2x16x4xf32, #tpu.memory_space<vmem>>, vector<1x8x1x1x16x4xf32>
    %85 = vector.shape_cast %84 : vector<1x8x1x1x16x4xf32> to vector<8x16x4xf32>
    %86 = vector.shape_cast %83 : vector<8x16x4xf32> to vector<1x8x1x1x16x4xf32>
    tpu.vector_store %arg5[%c0_69, %c0_70, %c1_71, %c1_72, %c0_73, %c0_74], %86 {strides = array<i32>} : memref<1x8x2x2x16x4xf32, #tpu.memory_space<vmem>>, vector<1x8x1x1x16x4xf32>,
    return
  }
  func.func @transform_0(%arg0: i32, %arg1: i32) -> (i32, i32, i32, i32) {
    %c0_i32 = arith.constant 0 : i32
    %c0_i32_0 = arith.constant 0 : i32
    %c0_i32_1 = arith.constant 0 : i32
    %c0_i32_2 = arith.constant 0 : i32
    %c0_i32_3 = arith.constant 0 : i32
    return %c0_i32, %c0_i32_0, %c0_i32_1, %c0_i32_2 : i32, i32, i32, i32
  }
  func.func @transform_1(%arg0: i32, %arg1: i32) -> (i32, i32) {
    %c0_i32 = arith.constant 0 : i32
    %c0_i32_0 = arith.constant 0 : i32
    %c0_i32_1 = arith.constant 0 : i32
    return %c0_i32, %c0_i32_0 : i32, i32
  }
  func.func @transform_2(%arg0: i32, %arg1: i32) -> (i32, i32, i32, i32) {
    %c0_i32 = arith.constant 0 : i32
    %c0_i32_0 = arith.constant 0 : i32
    %c0_i32_1 = arith.constant 0 : i32
    %c0_i32_2 = arith.constant 0 : i32
    return %arg0, %c0_i32, %c0_i32_0, %c0_i32_1 : i32, i32, i32, i32
  }
  func.func @transform_3(%arg0: i32, %arg1: i32) -> (i32, i32, i32, i32, i32, i32) {
    %c0_i32 = arith.constant 0 : i32
    %c0_i32_0 = arith.constant 0 : i32
    %c0_i32_1 = arith.constant 0 : i32
    %c0_i32_2 = arith.constant 0 : i32
    %c0_i32_3 = arith.constant 0 : i32
    return %arg0, %arg1, %c0_i32, %c0_i32_0, %c0_i32_1, %c0_i32_2 : i32, i32, i32, i32, i32, i32
  }
}

</mosaic_0001>

<llo_original>
// kernel: tpu_custom_call.1
$region0: #{tpu_custom_call.1}
  #allocation0 [shape = 'u32[]', space=smem, size = 0x4, offset = 0x4, fixed_abs, tag = 'smem constant byte address 0x4 - core index']
  #allocation1 [shape = 'u32[72,128]{1,0:T(1,128)}', space=vmem, size = 0x9000, scoped, tag = 'internal scratch']
  %s0 = inlined_call_operand.vmem [shape: bf16[2,2,16,4], index: 0, kind: input, shape index: {}]
  %s1 = inlined_call_operand.vmem [shape: f32[1,4], index: 1, kind: input, shape index: {}]
  %s2 = inlined_call_operand.vmem [shape: bf16[2,18,18,4], index: 2, kind: input, shape index: {}]
  %s3 = inlined_call_operand.vmem [shape: f32[2,16,2,2,16,4], index: 3, kind: output, shape index: {}]
  %s4 = sld [smem:[#allocation0]]
  $region45: #{tpu_custom_call.1} parent=0
    _
  %s6 = ssub.s32 1, %s4
  %s7 = scalar_select 0, %s6, %s4
  loop: start=0, step=1, limit=6
  $region2: #{tpu_custom_call.1} parent=0 // loop_pre_header
    _
  $region3: #{tpu_custom_call.1} parent=0 // loop_header
    %s9 = sphi 0, %s13
    %p10 = scmp.ge.s32.totalorder %s9, 6
    %s16 = sphi 0, %s28
    %s17 = sphi 0, %s24
    %s18 = sphi 0, %s16
    %s19 = sphi 0, %s17
    %s20 = sphi 0, %s18
    %s21 = sphi 0, %s19
    %s29 = sphi 0, %s29
    %s31 = sphi 0, %s29
    %s32 = sphi 0, %s31
    %s46 = sphi 0, %s32
    %s50 = sphi 0, %s50
    %s52 = sphi 0, %s50
    %s53 = sphi 0, %s52
    %s67 = sphi 0, %s53
    %s73 = sphi 0, %s75
    %s76 = sphi 0, %s73
    %s77 = sphi 0, %s76
    %s93 = sphi 0, %s77
    %s101 = sphi 0, %s103
    %s104 = sphi 0, %s101
    %s105 = sphi 0, %s104
    %s121 = sphi 0, %s105
  $region4: #{tpu_custom_call.1} parent=0 // loop_header_branch
    %12 = sbr.rel (%p10) target = $region8
  $region5: #{tpu_custom_call.1} parent=0 // loop_body
    %s14 = ssub.s32 %s9, 1
    %s15 = ssub.s32 %s9, 2
    %s22 = sadd.s32 1, %s17
    %p23 = scmp.ge.s32.totalorder %s22, 2
    %s24 = scalar_select %p23, 0, %s22
    %s25 = sadd.s32 1, %s16
    %s26 = scalar_select %p23, %s25, %s16
    %p27 = scmp.ge.s32.totalorder %s26, 2
    %s28 = scalar_select %p27, 0, %s26
    %s30 = sadd.s32 %s29, 1
    %p33 = scmp.eq.s32.totalorder %s9, 3
    %p34 = scmp.ne.s32.totalorder %s29, %s31
    %p35 = scmp.eq.s32.totalorder %s9, 0
    %p36 = por %p34, %p35
    %p37 = scmp.ne.s32.totalorder %s29, %s31
    %p38 = scmp.eq.s32.totalorder %s14, 3
    %p39 = por %p37, %p38
    %p40 = scmp.ne.s32.totalorder %s31, %s32
    %p41 = scmp.eq.s32.totalorder %s14, 0
    %p42 = por %p40, %p41
    %p43 = scmp.ne.s32.totalorder %s31, %s32
    %p44 = scmp.eq.s32.totalorder %s15, 3
    %p45 = por %p43, %p44
    %p47 = scmp.ne.s32.totalorder %s32, %s46
    %p48 = scmp.eq.s32.totalorder %s15, 0
    %p49 = por %p47, %p48
    %s51 = sadd.s32 %s50, 1
    %p54 = scmp.eq.s32.totalorder %s9, 3
    %p55 = scmp.ne.s32.totalorder %s50, %s52
    %p56 = scmp.eq.s32.totalorder %s9, 0
    %p57 = por %p55, %p56
    %p58 = scmp.ne.s32.totalorder %s50, %s52
    %p59 = scmp.eq.s32.totalorder %s14, 3
    %p60 = por %p58, %p59
    %p61 = scmp.ne.s32.totalorder %s52, %s53
    %p62 = scmp.eq.s32.totalorder %s14, 0
    %p63 = por %p61, %p62
    %p64 = scmp.ne.s32.totalorder %s52, %s53
    %p65 = scmp.eq.s32.totalorder %s15, 3
    %p66 = por %p64, %p65
    %p68 = scmp.ne.s32.totalorder %s53, %s67
    %p69 = scmp.eq.s32.totalorder %s15, 0
    %p70 = por %p68, %p69
    %s71 = ssub.s32 %s16, %s28
    %p72 = scmp.eq.s32.totalorder %s71, 0
    %s74 = sadd.s32 %s73, 1
    %s75 = scalar_select %p72, %s73, %s74
    %p78 = pneg %p72
    %p79 = scmp.eq.s32.totalorder %s9, 3
    %p80 = por %p78, %p79
    %p81 = scmp.ne.s32.totalorder %s73, %s76
    %p82 = scmp.eq.s32.totalorder %s9, 0
    %p83 = por %p81, %p82
    %p84 = scmp.ne.s32.totalorder %s73, %s76
    %p85 = scmp.eq.s32.totalorder %s14, 3
    %p86 = por %p84, %p85
    %p87 = scmp.ne.s32.totalorder %s76, %s77
    %p88 = scmp.eq.s32.totalorder %s14, 0
    %p89 = por %p87, %p88
    %p90 = scmp.ne.s32.totalorder %s76, %s77
    %p91 = scmp.eq.s32.totalorder %s15, 3
    %p92 = por %p90, %p91
    %p94 = scmp.ne.s32.totalorder %s77, %s93
    %p95 = scmp.eq.s32.totalorder %s15, 0
    %p96 = por %p94, %p95
    %s97 = ssub.s32 %s16, %s28
    %s98 = ssub.s32 %s17, %s24
    %s99 = sor.u32 %s97, %s98
    %p100 = scmp.eq.s32.totalorder %s99, 0
    %s102 = sadd.s32 %s101, 1
    %s103 = scalar_select %p100, %s101, %s102
    %p106 = pneg %p100
    %p107 = scmp.eq.s32.totalorder %s9, 3
    %p108 = por %p106, %p107
    %p109 = scmp.ne.s32.totalorder %s101, %s104
    %p110 = scmp.eq.s32.totalorder %s9, 0
    %p111 = por %p109, %p110
    %p112 = scmp.ne.s32.totalorder %s101, %s104
    %p113 = scmp.eq.s32.totalorder %s14, 3
    %p114 = por %p112, %p113
    %p115 = scmp.ne.s32.totalorder %s104, %s105
    %p116 = scmp.eq.s32.totalorder %s14, 0
    %p117 = por %p115, %p116
    %p118 = scmp.ne.s32.totalorder %s104, %s105
    %p119 = scmp.eq.s32.totalorder %s15, 3
    %p120 = por %p118, %p119
    %p122 = scmp.ne.s32.totalorder %s105, %s121
    %p123 = scmp.eq.s32.totalorder %s15, 0
    %p124 = por %p122, %p123
    %p125 = scmp.le.s32.totalorder 1, %s9
    %p126 = scmp.lt.s32.totalorder %s9, 5
    %p127 = pnand %p125, %p126
    %p128 = pneg %p127
    // Predicated region
    $region9: #{tpu_custom_call.1} parent=5 // pred_check
      _
    $region10: #{tpu_custom_call.1} parent=5 // pred_check_branch
      %130 = sbr.rel (%p127) target = $region12
    $region11: #{tpu_custom_call.1} parent=5 // pred_region
      %s131 = ssub.s32 %s9, 1
      // Predicated region
      $region13: #{tpu_custom_call.1} parent=11 // pred_check
        %p132 = pneg %p42
      $region14: #{tpu_custom_call.1} parent=11 // pred_check_branch
        %134 = sbr.rel (%p132) target = $region16
      $region15: #{tpu_custom_call.1} parent=11 // pred_region
        _
      $region16: #{tpu_custom_call.1} parent=11 // pred_fallthru
        _
      // Predicated region
      $region17: #{tpu_custom_call.1} parent=11 // pred_check
        %p135 = pneg %p63
      $region18: #{tpu_custom_call.1} parent=11 // pred_check_branch
        %137 = sbr.rel (%p135) target = $region20
      $region19: #{tpu_custom_call.1} parent=11 // pred_region
        _
      $region20: #{tpu_custom_call.1} parent=11 // pred_fallthru
        _
    $region12: #{tpu_custom_call.1} parent=5 // pred_fallthru
      _
    %p138 = scmp.lt.s32.totalorder %s9, 4
    // Predicated region
    $region21: #{tpu_custom_call.1} parent=5 // pred_check
      %p139 = pneg %p138
    $region22: #{tpu_custom_call.1} parent=5 // pred_check_branch
      %141 = sbr.rel (%p139) target = $region24
    $region23: #{tpu_custom_call.1} parent=5 // pred_region
      // Predicated region
      $region25: #{tpu_custom_call.1} parent=23 // pred_check
        %p142 = pneg %p83
      $region26: #{tpu_custom_call.1} parent=23 // pred_check_branch
        %144 = sbr.rel (%p142) target = $region28
      $region27: #{tpu_custom_call.1} parent=23 // pred_region
        %p145 = scmp.lt.s32.totalorder %s16, 1
        %s146 = scalar_select %p145, %s16, 1
        %s147 = smul.addr %s146, 54
        %s148 = smul.addr %s147, 4
        %s149 = scalar_lea.vmem %s2, %s148
      $region28: #{tpu_custom_call.1} parent=23 // pred_fallthru
        _
    $region24: #{tpu_custom_call.1} parent=5 // pred_fallthru
      _
    %p150 = scmp.le.s32.totalorder 1, %s9
    %p151 = scmp.lt.s32.totalorder %s9, 5
    %p152 = pnand %p150, %p151
    %p153 = pneg %p152
    // Predicated region
    $region29: #{tpu_custom_call.1} parent=5 // pred_check
      _
    $region30: #{tpu_custom_call.1} parent=5 // pred_check_branch
      %155 = sbr.rel (%p152) target = $region32
    $region31: #{tpu_custom_call.1} parent=5 // pred_region
      %s156 = ssub.s32 %s9, 1
      %p157 = pneg %p42
      %p158 = pneg %p39
      %p159 = pneg %p63
      %p160 = pneg %p60
      %p161 = scmp.lt.s32.totalorder %s18, 1
      %s162 = scalar_select %p161, %s18, 1
      %s163 = smul.addr %s162, 54
      %s164 = smul.addr %s163, 4
      %s165 = scalar_lea.vmem %s2, %s164
      %p166 = pneg %p89
      %p167 = pneg %p86
      %p168 = pneg %p117
      %p169 = pneg %p114
      %s170 = smul.u32 8, %s19
      %p171 = scmp.lt.s32.totalorder %s18, 1
      %s172 = scalar_select %p171, %s18, 1
      %p173 = scmp.lt.s32.totalorder %s170, 15
      %s174 = scalar_select %p173, %s170, 15
      %s175 = smul.addr %s174, 8
      %s176 = smul.addr %s172, 128
      %s177 = sadd.s32 %s175, %s176
      %s178 = smul.addr %s177, 8
      %s179 = scalar_lea.vmem %s3, %s178
      %p180 = scmp.lt.s32.totalorder %s18, 1
      %s181 = scalar_select %p180, %s18, 1
      %s182 = smul.addr %s181, 54
      %s183 = smul.addr %s182, 4
      %s184 = scalar_lea.vmem %s2, %s183
      %s185 = smul.u32 8, %s19
      %p186 = scmp.lt.s32.totalorder %s18, 1
      %s187 = scalar_select %p186, %s18, 1
      %p188 = scmp.lt.s32.totalorder %s185, 15
      %s189 = scalar_select %p188, %s185, 15
      %s190 = smul.addr %s189, 8
      %s191 = smul.addr %s187, 128
      %s192 = sadd.s32 %s190, %s191
      %s193 = smul.addr %s192, 8
      %s194 = scalar_lea.vmem %s3, %s193
      %s195 = smul.u32 8, %s19
      %s197 = smul.u32 %s19, 8
      %s198 = smul.u32 %s197, 3
      %s199 = smul.addr %s198, 4
      %s200 = scalar_lea.vmem %s184, %s199
      %v201 = vld [vmem:[%s200] sm:$0xf]
      %v202 = vld [vmem:[%s200 + $0x4] sm:$0xf]
      %v203 = vld [vmem:[%s200 + $0xc] sm:$0xf]
      %v204 = vld [vmem:[%s200 + $0x10] sm:$0xf]
      %v205 = vld [vmem:[%s200 + $0x18] sm:$0xf]
      %v206 = vld [vmem:[%s200 + $0x1c] sm:$0xf]
      %v207 = vld [vmem:[%s200 + $0x24] sm:$0xf]
      %v208 = vld [vmem:[%s200 + $0x28] sm:$0xf]
      %v209 = vld [vmem:[%s200 + $0x30] sm:$0xf]
      %v210 = vld [vmem:[%s200 + $0x34] sm:$0xf]
      %v211 = vld [vmem:[%s200 + $0x3c] sm:$0xf]
      %v212 = vld [vmem:[%s200 + $0x40] sm:$0xf]
      %v213 = vld [vmem:[%s200 + $0x48] sm:$0xf]
      %v214 = vld [vmem:[%s200 + $0x4c] sm:$0xf]
      %v215 = vld [vmem:[%s200 + $0x54] sm:$0xf]
      %v216 = vld [vmem:[%s200 + $0x58] sm:$0xf]
      %v217 = vld [vmem:[%s200 + $0x8] sm:$0x1]
      %v218 = vld [vmem:[%s200 + $0x14] sm:$0x1]
      %v219 = vld [vmem:[%s200 + $0x20] sm:$0x1]
      %v220 = vld [vmem:[%s200 + $0x2c] sm:$0x1]
      %v221 = vld [vmem:[%s200 + $0x38] sm:$0x1]
      %v222 = vld [vmem:[%s200 + $0x44] sm:$0x1]
      %v223 = vld [vmem:[%s200 + $0x50] sm:$0x1]
      %v224 = vld [vmem:[%s200 + $0x5c] sm:$0x1]
      %v225 = vld [vmem:[%s200] sm:$0xe]
      %v226 = vld [vmem:[%s200 + $0xc] sm:$0xe]
      %v227 = vld [vmem:[%s200 + $0x18] sm:$0xe]
      %v228 = vld [vmem:[%s200 + $0x24] sm:$0xe]
      %v229 = vld [vmem:[%s200 + $0x30] sm:$0xe]
      %v230 = vld [vmem:[%s200 + $0x3c] sm:$0xe]
      %v231 = vld [vmem:[%s200 + $0x48] sm:$0xe]
      %v232 = vld [vmem:[%s200 + $0x54] sm:$0xe]
      %s233 = sadd.s32 %s197, 1
      %s234 = smul.u32 %s233, 3
      %s235 = smul.addr %s234, 4
      %s236 = scalar_lea.vmem %s184, %s235
      %v237 = vld [vmem:[%s236] sm:$0xf]
      %v238 = vld [vmem:[%s236 + $0x4] sm:$0xf]
      %v239 = vld [vmem:[%s236 + $0xc] sm:$0xf]
      %v240 = vld [vmem:[%s236 + $0x10] sm:$0xf]
      %v241 = vld [vmem:[%s236 + $0x18] sm:$0xf]
      %v242 = vld [vmem:[%s236 + $0x1c] sm:$0xf]
      %v243 = vld [vmem:[%s236 + $0x24] sm:$0xf]
      %v244 = vld [vmem:[%s236 + $0x28] sm:$0xf]
      %v245 = vld [vmem:[%s236 + $0x30] sm:$0xf]
      %v246 = vld [vmem:[%s236 + $0x34] sm:$0xf]
      %v247 = vld [vmem:[%s236 + $0x3c] sm:$0xf]
      %v248 = vld [vmem:[%s236 + $0x40] sm:$0xf]
      %v249 = vld [vmem:[%s236 + $0x48] sm:$0xf]
      %v250 = vld [vmem:[%s236 + $0x4c] sm:$0xf]
      %v251 = vld [vmem:[%s236 + $0x54] sm:$0xf]
      %v252 = vld [vmem:[%s236 + $0x58] sm:$0xf]
      %v253 = vld [vmem:[%s236 + $0x8] sm:$0x1]
      %v254 = vld [vmem:[%s236 + $0x14] sm:$0x1]
      %v255 = vld [vmem:[%s236 + $0x20] sm:$0x1]
      %v256 = vld [vmem:[%s236 + $0x2c] sm:$0x1]
      %v257 = vld [vmem:[%s236 + $0x38] sm:$0x1]
      %v258 = vld [vmem:[%s236 + $0x44] sm:$0x1]
      %v259 = vld [vmem:[%s236 + $0x50] sm:$0x1]
      %v260 = vld [vmem:[%s236 + $0x5c] sm:$0x1]
      %v261 = vld [vmem:[%s236] sm:$0xe]
      %v262 = vld [vmem:[%s236 + $0xc] sm:$0xe]
      %v263 = vld [vmem:[%s236 + $0x18] sm:$0xe]
      %v264 = vld [vmem:[%s236 + $0x24] sm:$0xe]
      %v265 = vld [vmem:[%s236 + $0x30] sm:$0xe]
      %v266 = vld [vmem:[%s236 + $0x3c] sm:$0xe]
      %v267 = vld [vmem:[%s236 + $0x48] sm:$0xe]
      %v268 = vld [vmem:[%s236 + $0x54] sm:$0xe]
      %s269 = sadd.s32 %s197, 2
      %s270 = smul.u32 %s269, 3
      %s271 = smul.addr %s270, 4
      %s272 = scalar_lea.vmem %s184, %s271
      %v273 = vld [vmem:[%s272] sm:$0xf]
      %v274 = vld [vmem:[%s272 + $0x4] sm:$0xf]
      %v275 = vld [vmem:[%s272 + $0xc] sm:$0xf]
      %v276 = vld [vmem:[%s272 + $0x10] sm:$0xf]
      %v277 = vld [vmem:[%s272 + $0x18] sm:$0xf]
      %v278 = vld [vmem:[%s272 + $0x1c] sm:$0xf]
      %v279 = vld [vmem:[%s272 + $0x24] sm:$0xf]
      %v280 = vld [vmem:[%s272 + $0x28] sm:$0xf]
      %v281 = vld [vmem:[%s272 + $0x30] sm:$0xf]
      %v282 = vld [vmem:[%s272 + $0x34] sm:$0xf]
      %v283 = vld [vmem:[%s272 + $0x3c] sm:$0xf]
      %v284 = vld [vmem:[%s272 + $0x40] sm:$0xf]
      %v285 = vld [vmem:[%s272 + $0x48] sm:$0xf]
      %v286 = vld [vmem:[%s272 + $0x4c] sm:$0xf]
      %v287 = vld [vmem:[%s272 + $0x54] sm:$0xf]
      %v288 = vld [vmem:[%s272 + $0x58] sm:$0xf]
      %v289 = vld [vmem:[%s272 + $0x8] sm:$0x1]
      %v290 = vld [vmem:[%s272 + $0x14] sm:$0x1]
      %v291 = vld [vmem:[%s272 + $0x20] sm:$0x1]
      %v292 = vld [vmem:[%s272 + $0x2c] sm:$0x1]
      %v293 = vld [vmem:[%s272 + $0x38] sm:$0x1]
      %v294 = vld [vmem:[%s272 + $0x44] sm:$0x1]
      %v295 = vld [vmem:[%s272 + $0x50] sm:$0x1]
      %v296 = vld [vmem:[%s272 + $0x5c] sm:$0x1]
      %v297 = vld [vmem:[%s272] sm:$0xe]
      %v298 = vld [vmem:[%s272 + $0xc] sm:$0xe]
      %v299 = vld [vmem:[%s272 + $0x18] sm:$0xe]
      %v300 = vld [vmem:[%s272 + $0x24] sm:$0xe]
      %v301 = vld [vmem:[%s272 + $0x30] sm:$0xe]
      %v302 = vld [vmem:[%s272 + $0x3c] sm:$0xe]
      %v303 = vld [vmem:[%s272 + $0x48] sm:$0xe]
      %v304 = vld [vmem:[%s272 + $0x54] sm:$0xe]
      %v305 = vld [vmem:[%s1] sm:$0x1]
      %v322 = vunpack.c.l.b16 %v201
      %v323 = vunpack.c.l.b16 %v202
      %v324 = vunpack.c.l.b16 %v203
      %v325 = vunpack.c.l.b16 %v204
      %v326 = vunpack.c.l.b16 %v205
      %v327 = vunpack.c.l.b16 %v206
      %v328 = vunpack.c.l.b16 %v207
      %v329 = vunpack.c.l.b16 %v208
      %v330 = vunpack.c.l.b16 %v209
      %v331 = vunpack.c.l.b16 %v210
      %v332 = vunpack.c.l.b16 %v211
      %v333 = vunpack.c.l.b16 %v212
      %v334 = vunpack.c.l.b16 %v213
      %v335 = vunpack.c.l.b16 %v214
      %v336 = vunpack.c.l.b16 %v215
      %v337 = vunpack.c.l.b16 %v216
      %v338 = vpack.c.b16 %v323, %v322
      %v339 = vpack.c.b16 %v325, %v324
      %v340 = vpack.c.b16 %v327, %v326
      %v341 = vpack.c.b16 %v329, %v328
      %v342 = vpack.c.b16 %v331, %v330
      %v343 = vpack.c.b16 %v333, %v332
      %v344 = vpack.c.b16 %v335, %v334
      %v345 = vpack.c.b16 %v337, %v336
      %v354 = vunpack.c.l.b16 %v217
      %v355 = vunpack.c.l.b16 %v218
      %v356 = vunpack.c.l.b16 %v219
      %v357 = vunpack.c.l.b16 %v220
      %v358 = vunpack.c.l.b16 %v221
      %v359 = vunpack.c.l.b16 %v222
      %v360 = vunpack.c.l.b16 %v223
      %v361 = vunpack.c.l.b16 %v224
      %v362 = vpack.c.b16 %v354, %v354
      %v363 = vpack.c.b16 %v355, %v355
      %v364 = vpack.c.b16 %v356, %v356
      %v365 = vpack.c.b16 %v357, %v357
      %v366 = vpack.c.b16 %v358, %v358
      %v367 = vpack.c.b16 %v359, %v359
      %v368 = vpack.c.b16 %v360, %v360
      %v369 = vpack.c.b16 %v361, %v361
      %vm370 = vsmask.f32 7424
      %v372 = vshrl.u32 %v338, 16
      %v374 = vshll.u32 %v338, 16
      %v376 = vrot.slane %v374, 1
      %v377 = vor.u32 %v372, %v376
      %v379 = vshll.u32 %v362, 16
      %v381 = vrot.slane %v379, 1
      %v382 = vsel %vm370, %v377, %v381
      %v384 = vshrl.u32 %v339, 16
      %v386 = vshll.u32 %v339, 16
      %v388 = vrot.slane %v386, 1
      %v389 = vor.u32 %v384, %v388
      %v391 = vshll.u32 %v363, 16
      %v393 = vrot.slane %v391, 1
      %v394 = vsel %vm370, %v389, %v393
      %v396 = vshrl.u32 %v340, 16
      %v398 = vshll.u32 %v340, 16
      %v400 = vrot.slane %v398, 1
      %v401 = vor.u32 %v396, %v400
      %v403 = vshll.u32 %v364, 16
      %v405 = vrot.slane %v403, 1
      %v406 = vsel %vm370, %v401, %v405
      %v408 = vshrl.u32 %v341, 16
      %v410 = vshll.u32 %v341, 16
      %v412 = vrot.slane %v410, 1
      %v413 = vor.u32 %v408, %v412
      %v415 = vshll.u32 %v365, 16
      %v417 = vrot.slane %v415, 1
      %v418 = vsel %vm370, %v413, %v417
      %v420 = vshrl.u32 %v342, 16
      %v422 = vshll.u32 %v342, 16
      %v424 = vrot.slane %v422, 1
      %v425 = vor.u32 %v420, %v424
      %v427 = vshll.u32 %v366, 16
      %v429 = vrot.slane %v427, 1
      %v430 = vsel %vm370, %v425, %v429
      %v432 = vshrl.u32 %v343, 16
      %v434 = vshll.u32 %v343, 16
      %v436 = vrot.slane %v434, 1
      %v437 = vor.u32 %v432, %v436
      %v439 = vshll.u32 %v367, 16
      %v441 = vrot.slane %v439, 1
      %v442 = vsel %vm370, %v437, %v441
      %v444 = vshrl.u32 %v344, 16
      %v446 = vshll.u32 %v344, 16
      %v448 = vrot.slane %v446, 1
      %v449 = vor.u32 %v444, %v448
      %v451 = vshll.u32 %v368, 16
      %v453 = vrot.slane %v451, 1
      %v454 = vsel %vm370, %v449, %v453
      %v456 = vshrl.u32 %v345, 16
      %v458 = vshll.u32 %v345, 16
      %v460 = vrot.slane %v458, 1
      %v461 = vor.u32 %v456, %v460
      %v463 = vshll.u32 %v369, 16
      %v465 = vrot.slane %v463, 1
      %v466 = vsel %vm370, %v461, %v465
      %467 = vrot.lane.b32.xlu0 %v382, 4
      %v468 = vpop.permute.xlu0 %467
      %469 = vrot.lane.b32.xlu0 %v394, 4
      %v470 = vpop.permute.xlu0 %469
      %471 = vrot.lane.b32.xlu0 %v406, 4
      %v472 = vpop.permute.xlu0 %471
      %473 = vrot.lane.b32.xlu0 %v418, 4
      %v474 = vpop.permute.xlu0 %473
      %475 = vrot.lane.b32.xlu0 %v430, 4
      %v476 = vpop.permute.xlu0 %475
      %477 = vrot.lane.b32.xlu0 %v442, 4
      %v478 = vpop.permute.xlu0 %477
      %479 = vrot.lane.b32.xlu0 %v454, 4
      %v480 = vpop.permute.xlu0 %479
      %481 = vrot.lane.b32.xlu0 %v466, 4
      %v482 = vpop.permute.xlu0 %481
      %v499 = vunpack.c.l.b16 %v237
      %v500 = vunpack.c.l.b16 %v238
      %v501 = vunpack.c.l.b16 %v239
      %v502 = vunpack.c.l.b16 %v240
      %v503 = vunpack.c.l.b16 %v241
      %v504 = vunpack.c.l.b16 %v242
      %v505 = vunpack.c.l.b16 %v243
      %v506 = vunpack.c.l.b16 %v244
      %v507 = vunpack.c.l.b16 %v245
      %v508 = vunpack.c.l.b16 %v246
      %v509 = vunpack.c.l.b16 %v247
      %v510 = vunpack.c.l.b16 %v248
      %v511 = vunpack.c.l.b16 %v249
      %v512 = vunpack.c.l.b16 %v250
      %v513 = vunpack.c.l.b16 %v251
      %v514 = vunpack.c.l.b16 %v252
      %v515 = vpack.c.b16 %v500, %v499
      %v516 = vpack.c.b16 %v502, %v501
      %v517 = vpack.c.b16 %v504, %v503
      %v518 = vpack.c.b16 %v506, %v505
      %v519 = vpack.c.b16 %v508, %v507
      %v520 = vpack.c.b16 %v510, %v509
      %v521 = vpack.c.b16 %v512, %v511
      %v522 = vpack.c.b16 %v514, %v513
      %523 = vrot.lane.b32.xlu0 %v515, 8
      %v524 = vpop.permute.xlu0 %523
      %525 = vrot.lane.b32.xlu0 %v516, 8
      %v526 = vpop.permute.xlu0 %525
      %527 = vrot.lane.b32.xlu0 %v517, 8
      %v528 = vpop.permute.xlu0 %527
      %529 = vrot.lane.b32.xlu0 %v518, 8
      %v530 = vpop.permute.xlu0 %529
      %531 = vrot.lane.b32.xlu0 %v519, 8
      %v532 = vpop.permute.xlu0 %531
      %533 = vrot.lane.b32.xlu0 %v520, 8
      %v534 = vpop.permute.xlu0 %533
      %535 = vrot.lane.b32.xlu0 %v521, 8
      %v536 = vpop.permute.xlu0 %535
      %537 = vrot.lane.b32.xlu0 %v522, 8
      %v538 = vpop.permute.xlu0 %537
      %v547 = vunpack.c.l.b16 %v253
      %v548 = vunpack.c.l.b16 %v254
      %v549 = vunpack.c.l.b16 %v255
      %v550 = vunpack.c.l.b16 %v256
      %v551 = vunpack.c.l.b16 %v257
      %v552 = vunpack.c.l.b16 %v258
      %v553 = vunpack.c.l.b16 %v259
      %v554 = vunpack.c.l.b16 %v260
      %v555 = vpack.c.b16 %v547, %v547
      %v556 = vpack.c.b16 %v548, %v548
      %v557 = vpack.c.b16 %v549, %v549
      %v558 = vpack.c.b16 %v550, %v550
      %v559 = vpack.c.b16 %v551, %v551
      %v560 = vpack.c.b16 %v552, %v552
      %v561 = vpack.c.b16 %v553, %v553
      %v562 = vpack.c.b16 %v554, %v554
      %v564 = vshrl.u32 %v515, 16
      %v566 = vshll.u32 %v515, 16
      %v568 = vrot.slane %v566, 1
      %v569 = vor.u32 %v564, %v568
      %v571 = vshll.u32 %v555, 16
      %v573 = vrot.slane %v571, 1
      %v574 = vsel %vm370, %v569, %v573
      %v576 = vshrl.u32 %v516, 16
      %v578 = vshll.u32 %v516, 16
      %v580 = vrot.slane %v578, 1
      %v581 = vor.u32 %v576, %v580
      %v583 = vshll.u32 %v556, 16
      %v585 = vrot.slane %v583, 1
      %v586 = vsel %vm370, %v581, %v585
      %v588 = vshrl.u32 %v517, 16
      %v590 = vshll.u32 %v517, 16
      %v592 = vrot.slane %v590, 1
      %v593 = vor.u32 %v588, %v592
      %v595 = vshll.u32 %v557, 16
      %v597 = vrot.slane %v595, 1
      %v598 = vsel %vm370, %v593, %v597
      %v600 = vshrl.u32 %v518, 16
      %v602 = vshll.u32 %v518, 16
      %v604 = vrot.slane %v602, 1
      %v605 = vor.u32 %v600, %v604
      %v607 = vshll.u32 %v558, 16
      %v609 = vrot.slane %v607, 1
      %v610 = vsel %vm370, %v605, %v609
      %v612 = vshrl.u32 %v519, 16
      %v614 = vshll.u32 %v519, 16
      %v616 = vrot.slane %v614, 1
      %v617 = vor.u32 %v612, %v616
      %v619 = vshll.u32 %v559, 16
      %v621 = vrot.slane %v619, 1
      %v622 = vsel %vm370, %v617, %v621
      %v624 = vshrl.u32 %v520, 16
      %v626 = vshll.u32 %v520, 16
      %v628 = vrot.slane %v626, 1
      %v629 = vor.u32 %v624, %v628
      %v631 = vshll.u32 %v560, 16
      %v633 = vrot.slane %v631, 1
      %v634 = vsel %vm370, %v629, %v633
      %v636 = vshrl.u32 %v521, 16
      %v638 = vshll.u32 %v521, 16
      %v640 = vrot.slane %v638, 1
      %v641 = vor.u32 %v636, %v640
      %v643 = vshll.u32 %v561, 16
      %v645 = vrot.slane %v643, 1
      %v646 = vsel %vm370, %v641, %v645
      %v648 = vshrl.u32 %v522, 16
      %v650 = vshll.u32 %v522, 16
      %v652 = vrot.slane %v650, 1
      %v653 = vor.u32 %v648, %v652
      %v655 = vshll.u32 %v562, 16
      %v657 = vrot.slane %v655, 1
      %v658 = vsel %vm370, %v653, %v657
      %659 = vrot.lane.b32.xlu0 %v574, 12
      %v660 = vpop.permute.xlu0 %659
      %661 = vrot.lane.b32.xlu0 %v586, 12
      %v662 = vpop.permute.xlu0 %661
      %663 = vrot.lane.b32.xlu0 %v598, 12
      %v664 = vpop.permute.xlu0 %663
      %665 = vrot.lane.b32.xlu0 %v610, 12
      %v666 = vpop.permute.xlu0 %665
      %667 = vrot.lane.b32.xlu0 %v622, 12
      %v668 = vpop.permute.xlu0 %667
      %669 = vrot.lane.b32.xlu0 %v634, 12
      %v670 = vpop.permute.xlu0 %669
      %671 = vrot.lane.b32.xlu0 %v646, 12
      %v672 = vpop.permute.xlu0 %671
      %673 = vrot.lane.b32.xlu0 %v658, 12
      %v674 = vpop.permute.xlu0 %673
      %vm675 = vcmask 31744
      %v677 = vsel %vm675, %v338, %v468
      %v679 = vsel %vm675, %v339, %v470
      %v681 = vsel %vm675, %v340, %v472
      %v683 = vsel %vm675, %v341, %v474
      %v685 = vsel %vm675, %v342, %v476
      %v687 = vsel %vm675, %v343, %v478
      %v689 = vsel %vm675, %v344, %v480
      %v691 = vsel %vm675, %v345, %v482
      %vm692 = vcmask 64512
      %v694 = vsel %vm692, %v677, %v524
      %v696 = vsel %vm692, %v679, %v526
      %v698 = vsel %vm692, %v681, %v528
      %v700 = vsel %vm692, %v683, %v530
      %v702 = vsel %vm692, %v685, %v532
      %v704 = vsel %vm692, %v687, %v534
      %v706 = vsel %vm692, %v689, %v536
      %v708 = vsel %vm692, %v691, %v538
      %vm709 = vcmask 97280
      %v711 = vsel %vm709, %v694, %v660
      %v713 = vsel %vm709, %v696, %v662
      %v715 = vsel %vm709, %v698, %v664
      %v717 = vsel %vm709, %v700, %v666
      %v719 = vsel %vm709, %v702, %v668
      %v721 = vsel %vm709, %v704, %v670
      %v723 = vsel %vm709, %v706, %v672
      %v725 = vsel %vm709, %v708, %v674
      %v726 = vld [vmem:[%s0] sm:$0xf]
      %v727 = vld [vmem:[%s0 + $0x4] sm:$0xf]
      %v730 = vunpack.c.l.b16 %v726
      %v731 = vunpack.c.l.b16 %v727
      %v732 = vpack.c.b16 %v731, %v730
      %vm734 = vcmask 130048
      %v735 = vsel %vm734, %v711, 0
      %v737 = vsel %vm734, %v713, 0
      %v739 = vsel %vm734, %v715, 0
      %v741 = vsel %vm734, %v717, 0
      %v743 = vsel %vm734, %v719, 0
      %v745 = vsel %vm734, %v721, 0
      %v747 = vsel %vm734, %v723, 0
      %v749 = vsel %vm734, %v725, 0
      %751 = vmatpush.bf16.msra.mxu0 0
      %752 = vmatpush.bf16.msra.mxu0 0
      %753 = vmatpush.bf16.msra.mxu0 0
      %754 = vmatpush.bf16.msra.mxu0 0
      %755 = vmatpush.bf16.msra.mxu0 0
      %756 = vmatpush.bf16.msra.mxu0 0
      %757 = vmatpush.bf16.msra.mxu0 0
      %758 = vmatpush.bf16.msra.mxu0 %v732
      %759 = vmatmul.bf16.gmra.mxu0 %v735
      %v760 = vpop.f32.mrf.mxu0
      %v761 = vadd.f32 0.0, %v760
      %v762 = vpop.f32.mrf.mxu0
      %v763 = vadd.f32 0.0, %v762
      %764 = vmatmul.bf16.gmra.mxu0 %v737
      %v765 = vpop.f32.mrf.mxu0
      %v766 = vadd.f32 0.0, %v765
      %v767 = vpop.f32.mrf.mxu0
      %v768 = vadd.f32 0.0, %v767
      %769 = vmatmul.bf16.gmra.mxu0 %v739
      %v770 = vpop.f32.mrf.mxu0
      %v771 = vadd.f32 0.0, %v770
      %v772 = vpop.f32.mrf.mxu0
      %v773 = vadd.f32 0.0, %v772
      %774 = vmatmul.bf16.gmra.mxu0 %v741
      %v775 = vpop.f32.mrf.mxu0
      %v776 = vadd.f32 0.0, %v775
      %v777 = vpop.f32.mrf.mxu0
      %v778 = vadd.f32 0.0, %v777
      %779 = vmatmul.bf16.gmra.mxu0 %v743
      %v780 = vpop.f32.mrf.mxu0
      %v781 = vadd.f32 0.0, %v780
      %v782 = vpop.f32.mrf.mxu0
      %v783 = vadd.f32 0.0, %v782
      %784 = vmatmul.bf16.gmra.mxu0 %v745
      %v785 = vpop.f32.mrf.mxu0
      %v786 = vadd.f32 0.0, %v785
      %v787 = vpop.f32.mrf.mxu0
      %v788 = vadd.f32 0.0, %v787
      %789 = vmatmul.bf16.gmra.mxu0 %v747
      %v790 = vpop.f32.mrf.mxu0
      %v791 = vadd.f32 0.0, %v790
      %v792 = vpop.f32.mrf.mxu0
      %v793 = vadd.f32 0.0, %v792
      %794 = vmatmul.bf16.gmra.mxu0 %v749
      %v795 = vpop.f32.mrf.mxu0
      %v796 = vadd.f32 0.0, %v795
      %v797 = vpop.f32.mrf.mxu0
      %v798 = vadd.f32 0.0, %v797
      %799 = vdwg.mxu0
      %v801 = vperm.slane %v305, 0
      %v803 = vadd.f32 %v761, %v801
      %v804 = vadd.f32 %v763, %v801
      %v805 = vadd.f32 %v766, %v801
      %v806 = vadd.f32 %v768, %v801
      %v807 = vadd.f32 %v771, %v801
      %v808 = vadd.f32 %v773, %v801
      %v809 = vadd.f32 %v776, %v801
      %v810 = vadd.f32 %v778, %v801
      %v811 = vadd.f32 %v781, %v801
      %v812 = vadd.f32 %v783, %v801
      %v813 = vadd.f32 %v786, %v801
      %v814 = vadd.f32 %v788, %v801
      %v815 = vadd.f32 %v791, %v801
      %v816 = vadd.f32 %v793, %v801
      %v817 = vadd.f32 %v796, %v801
      %v818 = vadd.f32 %v798, %v801
      %819 = vst.msk [vmem:[%s194] sm:$0xff] %vm675, %v803
      %820 = vst.msk [vmem:[%s194 + $0x8] sm:$0xff] %vm675, %v804
      %821 = vst.msk [vmem:[%s194 + $0x40] sm:$0xff] %vm675, %v805
      %822 = vst.msk [vmem:[%s194 + $0x48] sm:$0xff] %vm675, %v806
      %823 = vst.msk [vmem:[%s194 + $0x80] sm:$0xff] %vm675, %v807
      %824 = vst.msk [vmem:[%s194 + $0x88] sm:$0xff] %vm675, %v808
      %825 = vst.msk [vmem:[%s194 + $0xc0] sm:$0xff] %vm675, %v809
      %826 = vst.msk [vmem:[%s194 + $0xc8] sm:$0xff] %vm675, %v810
      %827 = vst.msk [vmem:[%s194 + $0x100] sm:$0xff] %vm675, %v811
      %828 = vst.msk [vmem:[%s194 + $0x108] sm:$0xff] %vm675, %v812
      %829 = vst.msk [vmem:[%s194 + $0x140] sm:$0xff] %vm675, %v813
      %830 = vst.msk [vmem:[%s194 + $0x148] sm:$0xff] %vm675, %v814
      %831 = vst.msk [vmem:[%s194 + $0x180] sm:$0xff] %vm675, %v815
      %832 = vst.msk [vmem:[%s194 + $0x188] sm:$0xff] %vm675, %v816
      %833 = vst.msk [vmem:[%s194 + $0x1c0] sm:$0xff] %vm675, %v817
      %834 = vst.msk [vmem:[%s194 + $0x1c8] sm:$0xff] %vm675, %v818
      %v843 = vunpack.c.l.b16 %v225
      %v844 = vunpack.c.l.b16 %v226
      %v845 = vunpack.c.l.b16 %v227
      %v846 = vunpack.c.l.b16 %v228
      %v847 = vunpack.c.l.b16 %v229
      %v848 = vunpack.c.l.b16 %v230
      %v849 = vunpack.c.l.b16 %v231
      %v850 = vunpack.c.l.b16 %v232
      %v851 = vpack.c.b16 %v323, %v843
      %v852 = vpack.c.b16 %v325, %v844
      %v853 = vpack.c.b16 %v327, %v845
      %v854 = vpack.c.b16 %v329, %v846
      %v855 = vpack.c.b16 %v331, %v847
      %v856 = vpack.c.b16 %v333, %v848
      %v857 = vpack.c.b16 %v335, %v849
      %v858 = vpack.c.b16 %v337, %v850
      %v860 = vshrl.u32 %v851, 16
      %v862 = vshll.u32 %v851, 16
      %v864 = vrot.slane %v862, 1
      %v865 = vor.u32 %v860, %v864
      %v866 = vsel %vm370, %v865, %v381
      %v867 = vshrl.u32 %v362, 16
      %v870 = vshrl.u32 %v852, 16
      %v872 = vshll.u32 %v852, 16
      %v874 = vrot.slane %v872, 1
      %v875 = vor.u32 %v870, %v874
      %v876 = vsel %vm370, %v875, %v393
      %v877 = vshrl.u32 %v363, 16
      %v880 = vshrl.u32 %v853, 16
      %v882 = vshll.u32 %v853, 16
      %v884 = vrot.slane %v882, 1
      %v885 = vor.u32 %v880, %v884
      %v886 = vsel %vm370, %v885, %v405
      %v887 = vshrl.u32 %v364, 16
      %v890 = vshrl.u32 %v854, 16
      %v892 = vshll.u32 %v854, 16
      %v894 = vrot.slane %v892, 1
      %v895 = vor.u32 %v890, %v894
      %v896 = vsel %vm370, %v895, %v417
      %v897 = vshrl.u32 %v365, 16
      %v900 = vshrl.u32 %v855, 16
      %v902 = vshll.u32 %v855, 16
      %v904 = vrot.slane %v902, 1
      %v905 = vor.u32 %v900, %v904
      %v906 = vsel %vm370, %v905, %v429
      %v907 = vshrl.u32 %v366, 16
      %v910 = vshrl.u32 %v856, 16
      %v912 = vshll.u32 %v856, 16
      %v914 = vrot.slane %v912, 1
      %v915 = vor.u32 %v910, %v914
      %v916 = vsel %vm370, %v915, %v441
      %v917 = vshrl.u32 %v367, 16
      %v920 = vshrl.u32 %v857, 16
      %v922 = vshll.u32 %v857, 16
      %v924 = vrot.slane %v922, 1
      %v925 = vor.u32 %v920, %v924
      %v926 = vsel %vm370, %v925, %v453
      %v927 = vshrl.u32 %v368, 16
      %v930 = vshrl.u32 %v858, 16
      %v932 = vshll.u32 %v858, 16
      %v934 = vrot.slane %v932, 1
      %v935 = vor.u32 %v930, %v934
      %v936 = vsel %vm370, %v935, %v465
      %v937 = vshrl.u32 %v369, 16
      %939 = vrot.lane.b32.xlu0 %v866, 4
      %v940 = vpop.permute.xlu0 %939
      %941 = vrot.lane.b32.xlu0 %v867, 4
      %v942 = vpop.permute.xlu0 %941
      %943 = vrot.lane.b32.xlu0 %v876, 4
      %v944 = vpop.permute.xlu0 %943
      %945 = vrot.lane.b32.xlu0 %v877, 4
      %v946 = vpop.permute.xlu0 %945
      %947 = vrot.lane.b32.xlu0 %v886, 4
      %v948 = vpop.permute.xlu0 %947
      %949 = vrot.lane.b32.xlu0 %v887, 4
      %v950 = vpop.permute.xlu0 %949
      %951 = vrot.lane.b32.xlu0 %v896, 4
      %v952 = vpop.permute.xlu0 %951
      %953 = vrot.lane.b32.xlu0 %v897, 4
      %v954 = vpop.permute.xlu0 %953
      %955 = vrot.lane.b32.xlu0 %v906, 4
      %v956 = vpop.permute.xlu0 %955
      %957 = vrot.lane.b32.xlu0 %v907, 4
      %v958 = vpop.permute.xlu0 %957
      %959 = vrot.lane.b32.xlu0 %v916, 4
      %v960 = vpop.permute.xlu0 %959
      %961 = vrot.lane.b32.xlu0 %v917, 4
      %v962 = vpop.permute.xlu0 %961
      %963 = vrot.lane.b32.xlu0 %v926, 4
      %v964 = vpop.permute.xlu0 %963
      %965 = vrot.lane.b32.xlu0 %v927, 4
      %v966 = vpop.permute.xlu0 %965
      %967 = vrot.lane.b32.xlu0 %v936, 4
      %v968 = vpop.permute.xlu0 %967
      %969 = vrot.lane.b32.xlu0 %v937, 4
      %v970 = vpop.permute.xlu0 %969
      %971 = vrot.lane.b32.xlu0 %v555, 8
      %v972 = vpop.permute.xlu0 %971
      %973 = vrot.lane.b32.xlu0 %v556, 8
      %v974 = vpop.permute.xlu0 %973
      %975 = vrot.lane.b32.xlu0 %v557, 8
      %v976 = vpop.permute.xlu0 %975
      %977 = vrot.lane.b32.xlu0 %v558, 8
      %v978 = vpop.permute.xlu0 %977
      %979 = vrot.lane.b32.xlu0 %v559, 8
      %v980 = vpop.permute.xlu0 %979
      %981 = vrot.lane.b32.xlu0 %v560, 8
      %v982 = vpop.permute.xlu0 %981
      %983 = vrot.lane.b32.xlu0 %v561, 8
      %v984 = vpop.permute.xlu0 %983
      %985 = vrot.lane.b32.xlu0 %v562, 8
      %v986 = vpop.permute.xlu0 %985
      %v995 = vunpack.c.l.b16 %v261
      %v996 = vunpack.c.l.b16 %v262
      %v997 = vunpack.c.l.b16 %v263
      %v998 = vunpack.c.l.b16 %v264
      %v999 = vunpack.c.l.b16 %v265
      %v1000 = vunpack.c.l.b16 %v266
      %v1001 = vunpack.c.l.b16 %v267
      %v1002 = vunpack.c.l.b16 %v268
      %v1003 = vpack.c.b16 %v500, %v995
      %v1004 = vpack.c.b16 %v502, %v996
      %v1005 = vpack.c.b16 %v504, %v997
      %v1006 = vpack.c.b16 %v506, %v998
      %v1007 = vpack.c.b16 %v508, %v999
      %v1008 = vpack.c.b16 %v510, %v1000
      %v1009 = vpack.c.b16 %v512, %v1001
      %v1010 = vpack.c.b16 %v514, %v1002
      %v1012 = vshrl.u32 %v1003, 16
      %v1014 = vshll.u32 %v1003, 16
      %v1016 = vrot.slane %v1014, 1
      %v1017 = vor.u32 %v1012, %v1016
      %v1018 = vsel %vm370, %v1017, %v573
      %v1019 = vshrl.u32 %v555, 16
      %v1022 = vshrl.u32 %v1004, 16
      %v1024 = vshll.u32 %v1004, 16
      %v1026 = vrot.slane %v1024, 1
      %v1027 = vor.u32 %v1022, %v1026
      %v1028 = vsel %vm370, %v1027, %v585
      %v1029 = vshrl.u32 %v556, 16
      %v1032 = vshrl.u32 %v1005, 16
      %v1034 = vshll.u32 %v1005, 16
      %v1036 = vrot.slane %v1034, 1
      %v1037 = vor.u32 %v1032, %v1036
      %v1038 = vsel %vm370, %v1037, %v597
      %v1039 = vshrl.u32 %v557, 16
      %v1042 = vshrl.u32 %v1006, 16
      %v1044 = vshll.u32 %v1006, 16
      %v1046 = vrot.slane %v1044, 1
      %v1047 = vor.u32 %v1042, %v1046
      %v1048 = vsel %vm370, %v1047, %v609
      %v1049 = vshrl.u32 %v558, 16
      %v1052 = vshrl.u32 %v1007, 16
      %v1054 = vshll.u32 %v1007, 16
      %v1056 = vrot.slane %v1054, 1
      %v1057 = vor.u32 %v1052, %v1056
      %v1058 = vsel %vm370, %v1057, %v621
      %v1059 = vshrl.u32 %v559, 16
      %v1062 = vshrl.u32 %v1008, 16
      %v1064 = vshll.u32 %v1008, 16
      %v1066 = vrot.slane %v1064, 1
      %v1067 = vor.u32 %v1062, %v1066
      %v1068 = vsel %vm370, %v1067, %v633
      %v1069 = vshrl.u32 %v560, 16
      %v1072 = vshrl.u32 %v1009, 16
      %v1074 = vshll.u32 %v1009, 16
      %v1076 = vrot.slane %v1074, 1
      %v1077 = vor.u32 %v1072, %v1076
      %v1078 = vsel %vm370, %v1077, %v645
      %v1079 = vshrl.u32 %v561, 16
      %v1082 = vshrl.u32 %v1010, 16
      %v1084 = vshll.u32 %v1010, 16
      %v1086 = vrot.slane %v1084, 1
      %v1087 = vor.u32 %v1082, %v1086
      %v1088 = vsel %vm370, %v1087, %v657
      %v1089 = vshrl.u32 %v562, 16
      %1091 = vrot.lane.b32.xlu0 %v1018, 12
      %v1092 = vpop.permute.xlu0 %1091
      %1093 = vrot.lane.b32.xlu0 %v1019, 12
      %v1094 = vpop.permute.xlu0 %1093
      %1095 = vrot.lane.b32.xlu0 %v1028, 12
      %v1096 = vpop.permute.xlu0 %1095
      %1097 = vrot.lane.b32.xlu0 %v1029, 12
      %v1098 = vpop.permute.xlu0 %1097
      %1099 = vrot.lane.b32.xlu0 %v1038, 12
      %v1100 = vpop.permute.xlu0 %1099
      %1101 = vrot.lane.b32.xlu0 %v1039, 12
      %v1102 = vpop.permute.xlu0 %1101
      %1103 = vrot.lane.b32.xlu0 %v1048, 12
      %v1104 = vpop.permute.xlu0 %1103
      %1105 = vrot.lane.b32.xlu0 %v1049, 12
      %v1106 = vpop.permute.xlu0 %1105
      %1107 = vrot.lane.b32.xlu0 %v1058, 12
      %v1108 = vpop.permute.xlu0 %1107
      %1109 = vrot.lane.b32.xlu0 %v1059, 12
      %v1110 = vpop.permute.xlu0 %1109
      %1111 = vrot.lane.b32.xlu0 %v1068, 12
      %v1112 = vpop.permute.xlu0 %1111
      %1113 = vrot.lane.b32.xlu0 %v1069, 12
      %v1114 = vpop.permute.xlu0 %1113
      %1115 = vrot.lane.b32.xlu0 %v1078, 12
      %v1116 = vpop.permute.xlu0 %1115
      %1117 = vrot.lane.b32.xlu0 %v1079, 12
      %v1118 = vpop.permute.xlu0 %1117
      %1119 = vrot.lane.b32.xlu0 %v1088, 12
      %v1120 = vpop.permute.xlu0 %1119
      %1121 = vrot.lane.b32.xlu0 %v1089, 12
      %v1122 = vpop.permute.xlu0 %1121
      %v1124 = vsel %vm675, %v338, %v940
      %v1126 = vsel %vm675, %v362, %v942
      %v1128 = vsel %vm675, %v339, %v944
      %v1130 = vsel %vm675, %v363, %v946
      %v1132 = vsel %vm675, %v340, %v948
      %v1134 = vsel %vm675, %v364, %v950
      %v1136 = vsel %vm675, %v341, %v952
      %v1138 = vsel %vm675, %v365, %v954
      %v1140 = vsel %vm675, %v342, %v956
      %v1142 = vsel %vm675, %v366, %v958
      %v1144 = vsel %vm675, %v343, %v960
      %v1146 = vsel %vm675, %v367, %v962
      %v1148 = vsel %vm675, %v344, %v964
      %v1150 = vsel %vm675, %v368, %v966
      %v1152 = vsel %vm675, %v345, %v968
      %v1154 = vsel %vm675, %v369, %v970
      %v1155 = vsel %vm692, %v1124, %v524
      %v1157 = vsel %vm692, %v1126, %v972
      %v1158 = vsel %vm692, %v1128, %v526
      %v1160 = vsel %vm692, %v1130, %v974
      %v1161 = vsel %vm692, %v1132, %v528
      %v1163 = vsel %vm692, %v1134, %v976
      %v1164 = vsel %vm692, %v1136, %v530
      %v1166 = vsel %vm692, %v1138, %v978
      %v1167 = vsel %vm692, %v1140, %v532
      %v1169 = vsel %vm692, %v1142, %v980
      %v1170 = vsel %vm692, %v1144, %v534
      %v1172 = vsel %vm692, %v1146, %v982
      %v1173 = vsel %vm692, %v1148, %v536
      %v1175 = vsel %vm692, %v1150, %v984
      %v1176 = vsel %vm692, %v1152, %v538
      %v1178 = vsel %vm692, %v1154, %v986
      %v1180 = vsel %vm709, %v1155, %v1092
      %v1182 = vsel %vm709, %v1157, %v1094
      %v1184 = vsel %vm709, %v1158, %v1096
      %v1186 = vsel %vm709, %v1160, %v1098
      %v1188 = vsel %vm709, %v1161, %v1100
      %v1190 = vsel %vm709, %v1163, %v1102
      %v1192 = vsel %vm709, %v1164, %v1104
      %v1194 = vsel %vm709, %v1166, %v1106
      %v1196 = vsel %vm709, %v1167, %v1108
      %v1198 = vsel %vm709, %v1169, %v1110
      %v1200 = vsel %vm709, %v1170, %v1112
      %v1202 = vsel %vm709, %v1172, %v1114
      %v1204 = vsel %vm709, %v1173, %v1116
      %v1206 = vsel %vm709, %v1175, %v1118
      %v1208 = vsel %vm709, %v1176, %v1120
      %v1210 = vsel %vm709, %v1178, %v1122
      %v1211 = vshrl.u32 %v1180, 16
      %v1213 = vshll.u32 %v1180, 16
      %v1215 = vrot.slane %v1213, 1
      %v1216 = vor.u32 %v1211, %v1215
      %v1217 = vshll.u32 %v1182, 16
      %v1219 = vrot.slane %v1217, 1
      %v1220 = vsel %vm370, %v1216, %v1219
      %v1221 = vshrl.u32 %v1184, 16
      %v1223 = vshll.u32 %v1184, 16
      %v1225 = vrot.slane %v1223, 1
      %v1226 = vor.u32 %v1221, %v1225
      %v1227 = vshll.u32 %v1186, 16
      %v1229 = vrot.slane %v1227, 1
      %v1230 = vsel %vm370, %v1226, %v1229
      %v1231 = vshrl.u32 %v1188, 16
      %v1233 = vshll.u32 %v1188, 16
      %v1235 = vrot.slane %v1233, 1
      %v1236 = vor.u32 %v1231, %v1235
      %v1237 = vshll.u32 %v1190, 16
      %v1239 = vrot.slane %v1237, 1
      %v1240 = vsel %vm370, %v1236, %v1239
      %v1241 = vshrl.u32 %v1192, 16
      %v1243 = vshll.u32 %v1192, 16
      %v1245 = vrot.slane %v1243, 1
      %v1246 = vor.u32 %v1241, %v1245
      %v1247 = vshll.u32 %v1194, 16
      %v1249 = vrot.slane %v1247, 1
      %v1250 = vsel %vm370, %v1246, %v1249
      %v1251 = vshrl.u32 %v1196, 16
      %v1253 = vshll.u32 %v1196, 16
      %v1255 = vrot.slane %v1253, 1
      %v1256 = vor.u32 %v1251, %v1255
      %v1257 = vshll.u32 %v1198, 16
      %v1259 = vrot.slane %v1257, 1
      %v1260 = vsel %vm370, %v1256, %v1259
      %v1261 = vshrl.u32 %v1200, 16
      %v1263 = vshll.u32 %v1200, 16
      %v1265 = vrot.slane %v1263, 1
      %v1266 = vor.u32 %v1261, %v1265
      %v1267 = vshll.u32 %v1202, 16
      %v1269 = vrot.slane %v1267, 1
      %v1270 = vsel %vm370, %v1266, %v1269
      %v1271 = vshrl.u32 %v1204, 16
      %v1273 = vshll.u32 %v1204, 16
      %v1275 = vrot.slane %v1273, 1
      %v1276 = vor.u32 %v1271, %v1275
      %v1277 = vshll.u32 %v1206, 16
      %v1279 = vrot.slane %v1277, 1
      %v1280 = vsel %vm370, %v1276, %v1279
      %v1281 = vshrl.u32 %v1208, 16
      %v1283 = vshll.u32 %v1208, 16
      %v1285 = vrot.slane %v1283, 1
      %v1286 = vor.u32 %v1281, %v1285
      %v1287 = vshll.u32 %v1210, 16
      %v1289 = vrot.slane %v1287, 1
      %v1290 = vsel %vm370, %v1286, %v1289
      %s1291 = scalar_lea.vmem %s0, 8
      %v1292 = vld [vmem:[%s1291] sm:$0xf]
      %v1293 = vld [vmem:[%s1291 + $0x4] sm:$0xf]
      %v1296 = vunpack.c.l.b16 %v1292
      %v1297 = vunpack.c.l.b16 %v1293
      %v1298 = vpack.c.b16 %v1297, %v1296
      %v1301 = vsel %vm734, %v1220, 0
      %v1304 = vsel %vm734, %v1230, 0
      %v1307 = vsel %vm734, %v1240, 0
      %v1310 = vsel %vm734, %v1250, 0
      %v1313 = vsel %vm734, %v1260, 0
      %v1316 = vsel %vm734, %v1270, 0
      %v1319 = vsel %vm734, %v1280, 0
      %v1322 = vsel %vm734, %v1290, 0
      %1324 = vmatpush.bf16.msra.mxu0 0
      %1325 = vmatpush.bf16.msra.mxu0 0
      %1326 = vmatpush.bf16.msra.mxu0 0
      %1327 = vmatpush.bf16.msra.mxu0 0
      %1328 = vmatpush.bf16.msra.mxu0 0
      %1329 = vmatpush.bf16.msra.mxu0 0
      %1330 = vmatpush.bf16.msra.mxu0 0
      %1331 = vmatpush.bf16.msra.mxu0 %v1298
      %1332 = vmatmul.bf16.gmra.mxu0 %v1301
      %v1333 = vpop.f32.mrf.mxu0
      %v1334 = vadd.f32 0.0, %v1333
      %v1335 = vpop.f32.mrf.mxu0
      %v1336 = vadd.f32 0.0, %v1335
      %1337 = vmatmul.bf16.gmra.mxu0 %v1304
      %v1338 = vpop.f32.mrf.mxu0
      %v1339 = vadd.f32 0.0, %v1338
      %v1340 = vpop.f32.mrf.mxu0
      %v1341 = vadd.f32 0.0, %v1340
      %1342 = vmatmul.bf16.gmra.mxu0 %v1307
      %v1343 = vpop.f32.mrf.mxu0
      %v1344 = vadd.f32 0.0, %v1343
      %v1345 = vpop.f32.mrf.mxu0
      %v1346 = vadd.f32 0.0, %v1345
      %1347 = vmatmul.bf16.gmra.mxu0 %v1310
      %v1348 = vpop.f32.mrf.mxu0
      %v1349 = vadd.f32 0.0, %v1348
      %v1350 = vpop.f32.mrf.mxu0
      %v1351 = vadd.f32 0.0, %v1350
      %1352 = vmatmul.bf16.gmra.mxu0 %v1313
      %v1353 = vpop.f32.mrf.mxu0
      %v1354 = vadd.f32 0.0, %v1353
      %v1355 = vpop.f32.mrf.mxu0
      %v1356 = vadd.f32 0.0, %v1355
      %1357 = vmatmul.bf16.gmra.mxu0 %v1316
      %v1358 = vpop.f32.mrf.mxu0
      %v1359 = vadd.f32 0.0, %v1358
      %v1360 = vpop.f32.mrf.mxu0
      %v1361 = vadd.f32 0.0, %v1360
      %1362 = vmatmul.bf16.gmra.mxu0 %v1319
      %v1363 = vpop.f32.mrf.mxu0
      %v1364 = vadd.f32 0.0, %v1363
      %v1365 = vpop.f32.mrf.mxu0
      %v1366 = vadd.f32 0.0, %v1365
      %1367 = vmatmul.bf16.gmra.mxu0 %v1322
      %v1368 = vpop.f32.mrf.mxu0
      %v1369 = vadd.f32 0.0, %v1368
      %v1370 = vpop.f32.mrf.mxu0
      %v1371 = vadd.f32 0.0, %v1370
      %1372 = vdwg.mxu0
      %v1373 = vadd.f32 %v1334, %v801
      %v1374 = vadd.f32 %v1336, %v801
      %v1375 = vadd.f32 %v1339, %v801
      %v1376 = vadd.f32 %v1341, %v801
      %v1377 = vadd.f32 %v1344, %v801
      %v1378 = vadd.f32 %v1346, %v801
      %v1379 = vadd.f32 %v1349, %v801
      %v1380 = vadd.f32 %v1351, %v801
      %v1381 = vadd.f32 %v1354, %v801
      %v1382 = vadd.f32 %v1356, %v801
      %v1383 = vadd.f32 %v1359, %v801
      %v1384 = vadd.f32 %v1361, %v801
      %v1385 = vadd.f32 %v1364, %v801
      %v1386 = vadd.f32 %v1366, %v801
      %v1387 = vadd.f32 %v1369, %v801
      %v1388 = vadd.f32 %v1371, %v801
      %s1389 = scalar_lea.vmem %s194, 16
      %1390 = vst.msk [vmem:[%s1389] sm:$0xff] %vm675, %v1373
      %1391 = vst.msk [vmem:[%s1389 + $0x8] sm:$0xff] %vm675, %v1374
      %1392 = vst.msk [vmem:[%s1389 + $0x40] sm:$0xff] %vm675, %v1375
      %1393 = vst.msk [vmem:[%s1389 + $0x48] sm:$0xff] %vm675, %v1376
      %1394 = vst.msk [vmem:[%s1389 + $0x80] sm:$0xff] %vm675, %v1377
      %1395 = vst.msk [vmem:[%s1389 + $0x88] sm:$0xff] %vm675, %v1378
      %1396 = vst.msk [vmem:[%s1389 + $0xc0] sm:$0xff] %vm675, %v1379
      %1397 = vst.msk [vmem:[%s1389 + $0xc8] sm:$0xff] %vm675, %v1380
      %1398 = vst.msk [vmem:[%s1389 + $0x100] sm:$0xff] %vm675, %v1381
      %1399 = vst.msk [vmem:[%s1389 + $0x108] sm:$0xff] %vm675, %v1382
      %1400 = vst.msk [vmem:[%s1389 + $0x140] sm:$0xff] %vm675, %v1383
      %1401 = vst.msk [vmem:[%s1389 + $0x148] sm:$0xff] %vm675, %v1384
      %1402 = vst.msk [vmem:[%s1389 + $0x180] sm:$0xff] %vm675, %v1385
      %1403 = vst.msk [vmem:[%s1389 + $0x188] sm:$0xff] %vm675, %v1386
      %1404 = vst.msk [vmem:[%s1389 + $0x1c0] sm:$0xff] %vm675, %v1387
      %1405 = vst.msk [vmem:[%s1389 + $0x1c8] sm:$0xff] %vm675, %v1388
      %1406 = vrot.lane.b32.xlu0 %v574, 4
      %v1407 = vpop.permute.xlu0 %1406
      %1408 = vrot.lane.b32.xlu0 %v586, 4
      %v1409 = vpop.permute.xlu0 %1408
      %1410 = vrot.lane.b32.xlu0 %v598, 4
      %v1411 = vpop.permute.xlu0 %1410
      %1412 = vrot.lane.b32.xlu0 %v610, 4
      %v1413 = vpop.permute.xlu0 %1412
      %1414 = vrot.lane.b32.xlu0 %v622, 4
      %v1415 = vpop.permute.xlu0 %1414
      %1416 = vrot.lane.b32.xlu0 %v634, 4
      %v1417 = vpop.permute.xlu0 %1416
      %1418 = vrot.lane.b32.xlu0 %v646, 4
      %v1419 = vpop.permute.xlu0 %1418
      %1420 = vrot.lane.b32.xlu0 %v658, 4
      %v1421 = vpop.permute.xlu0 %1420
      %v1438 = vunpack.c.l.b16 %v273
      %v1439 = vunpack.c.l.b16 %v274
      %v1440 = vunpack.c.l.b16 %v275
      %v1441 = vunpack.c.l.b16 %v276
      %v1442 = vunpack.c.l.b16 %v277
      %v1443 = vunpack.c.l.b16 %v278
      %v1444 = vunpack.c.l.b16 %v279
      %v1445 = vunpack.c.l.b16 %v280
      %v1446 = vunpack.c.l.b16 %v281
      %v1447 = vunpack.c.l.b16 %v282
      %v1448 = vunpack.c.l.b16 %v283
      %v1449 = vunpack.c.l.b16 %v284
      %v1450 = vunpack.c.l.b16 %v285
      %v1451 = vunpack.c.l.b16 %v286
      %v1452 = vunpack.c.l.b16 %v287
      %v1453 = vunpack.c.l.b16 %v288
      %v1454 = vpack.c.b16 %v1439, %v1438
      %v1455 = vpack.c.b16 %v1441, %v1440
      %v1456 = vpack.c.b16 %v1443, %v1442
      %v1457 = vpack.c.b16 %v1445, %v1444
      %v1458 = vpack.c.b16 %v1447, %v1446
      %v1459 = vpack.c.b16 %v1449, %v1448
      %v1460 = vpack.c.b16 %v1451, %v1450
      %v1461 = vpack.c.b16 %v1453, %v1452
      %1462 = vrot.lane.b32.xlu0 %v1454, 8
      %v1463 = vpop.permute.xlu0 %1462
      %1464 = vrot.lane.b32.xlu0 %v1455, 8
      %v1465 = vpop.permute.xlu0 %1464
      %1466 = vrot.lane.b32.xlu0 %v1456, 8
      %v1467 = vpop.permute.xlu0 %1466
      %1468 = vrot.lane.b32.xlu0 %v1457, 8
      %v1469 = vpop.permute.xlu0 %1468
      %1470 = vrot.lane.b32.xlu0 %v1458, 8
      %v1471 = vpop.permute.xlu0 %1470
      %1472 = vrot.lane.b32.xlu0 %v1459, 8
      %v1473 = vpop.permute.xlu0 %1472
      %1474 = vrot.lane.b32.xlu0 %v1460, 8
      %v1475 = vpop.permute.xlu0 %1474
      %1476 = vrot.lane.b32.xlu0 %v1461, 8
      %v1477 = vpop.permute.xlu0 %1476
      %v1486 = vunpack.c.l.b16 %v289
      %v1487 = vunpack.c.l.b16 %v290
      %v1488 = vunpack.c.l.b16 %v291
      %v1489 = vunpack.c.l.b16 %v292
      %v1490 = vunpack.c.l.b16 %v293
      %v1491 = vunpack.c.l.b16 %v294
      %v1492 = vunpack.c.l.b16 %v295
      %v1493 = vunpack.c.l.b16 %v296
      %v1494 = vpack.c.b16 %v1486, %v1486
      %v1495 = vpack.c.b16 %v1487, %v1487
      %v1496 = vpack.c.b16 %v1488, %v1488
      %v1497 = vpack.c.b16 %v1489, %v1489
      %v1498 = vpack.c.b16 %v1490, %v1490
      %v1499 = vpack.c.b16 %v1491, %v1491
      %v1500 = vpack.c.b16 %v1492, %v1492
      %v1501 = vpack.c.b16 %v1493, %v1493
      %v1503 = vshrl.u32 %v1454, 16
      %v1505 = vshll.u32 %v1454, 16
      %v1507 = vrot.slane %v1505, 1
      %v1508 = vor.u32 %v1503, %v1507
      %v1510 = vshll.u32 %v1494, 16
      %v1512 = vrot.slane %v1510, 1
      %v1513 = vsel %vm370, %v1508, %v1512
      %v1515 = vshrl.u32 %v1455, 16
      %v1517 = vshll.u32 %v1455, 16
      %v1519 = vrot.slane %v1517, 1
      %v1520 = vor.u32 %v1515, %v1519
      %v1522 = vshll.u32 %v1495, 16
      %v1524 = vrot.slane %v1522, 1
      %v1525 = vsel %vm370, %v1520, %v1524
      %v1527 = vshrl.u32 %v1456, 16
      %v1529 = vshll.u32 %v1456, 16
      %v1531 = vrot.slane %v1529, 1
      %v1532 = vor.u32 %v1527, %v1531
      %v1534 = vshll.u32 %v1496, 16
      %v1536 = vrot.slane %v1534, 1
      %v1537 = vsel %vm370, %v1532, %v1536
      %v1539 = vshrl.u32 %v1457, 16
      %v1541 = vshll.u32 %v1457, 16
      %v1543 = vrot.slane %v1541, 1
      %v1544 = vor.u32 %v1539, %v1543
      %v1546 = vshll.u32 %v1497, 16
      %v1548 = vrot.slane %v1546, 1
      %v1549 = vsel %vm370, %v1544, %v1548
      %v1551 = vshrl.u32 %v1458, 16
      %v1553 = vshll.u32 %v1458, 16
      %v1555 = vrot.slane %v1553, 1
      %v1556 = vor.u32 %v1551, %v1555
      %v1558 = vshll.u32 %v1498, 16
      %v1560 = vrot.slane %v1558, 1
      %v1561 = vsel %vm370, %v1556, %v1560
      %v1563 = vshrl.u32 %v1459, 16
      %v1565 = vshll.u32 %v1459, 16
      %v1567 = vrot.slane %v1565, 1
      %v1568 = vor.u32 %v1563, %v1567
      %v1570 = vshll.u32 %v1499, 16
      %v1572 = vrot.slane %v1570, 1
      %v1573 = vsel %vm370, %v1568, %v1572
      %v1575 = vshrl.u32 %v1460, 16
      %v1577 = vshll.u32 %v1460, 16
      %v1579 = vrot.slane %v1577, 1
      %v1580 = vor.u32 %v1575, %v1579
      %v1582 = vshll.u32 %v1500, 16
      %v1584 = vrot.slane %v1582, 1
      %v1585 = vsel %vm370, %v1580, %v1584
      %v1587 = vshrl.u32 %v1461, 16
      %v1589 = vshll.u32 %v1461, 16
      %v1591 = vrot.slane %v1589, 1
      %v1592 = vor.u32 %v1587, %v1591
      %v1594 = vshll.u32 %v1501, 16
      %v1596 = vrot.slane %v1594, 1
      %v1597 = vsel %vm370, %v1592, %v1596
      %1598 = vrot.lane.b32.xlu0 %v1513, 12
      %v1599 = vpop.permute.xlu0 %1598
      %1600 = vrot.lane.b32.xlu0 %v1525, 12
      %v1601 = vpop.permute.xlu0 %1600
      %1602 = vrot.lane.b32.xlu0 %v1537, 12
      %v1603 = vpop.permute.xlu0 %1602
      %1604 = vrot.lane.b32.xlu0 %v1549, 12
      %v1605 = vpop.permute.xlu0 %1604
      %1606 = vrot.lane.b32.xlu0 %v1561, 12
      %v1607 = vpop.permute.xlu0 %1606
      %1608 = vrot.lane.b32.xlu0 %v1573, 12
      %v1609 = vpop.permute.xlu0 %1608
      %1610 = vrot.lane.b32.xlu0 %v1585, 12
      %v1611 = vpop.permute.xlu0 %1610
      %1612 = vrot.lane.b32.xlu0 %v1597, 12
      %v1613 = vpop.permute.xlu0 %1612
      %v1615 = vsel %vm675, %v515, %v1407
      %v1617 = vsel %vm675, %v516, %v1409
      %v1619 = vsel %vm675, %v517, %v1411
      %v1621 = vsel %vm675, %v518, %v1413
      %v1623 = vsel %vm675, %v519, %v1415
      %v1625 = vsel %vm675, %v520, %v1417
      %v1627 = vsel %vm675, %v521, %v1419
      %v1629 = vsel %vm675, %v522, %v1421
      %v1631 = vsel %vm692, %v1615, %v1463
      %v1633 = vsel %vm692, %v1617, %v1465
      %v1635 = vsel %vm692, %v1619, %v1467
      %v1637 = vsel %vm692, %v1621, %v1469
      %v1639 = vsel %vm692, %v1623, %v1471
      %v1641 = vsel %vm692, %v1625, %v1473
      %v1643 = vsel %vm692, %v1627, %v1475
      %v1645 = vsel %vm692, %v1629, %v1477
      %v1647 = vsel %vm709, %v1631, %v1599
      %v1649 = vsel %vm709, %v1633, %v1601
      %v1651 = vsel %vm709, %v1635, %v1603
      %v1653 = vsel %vm709, %v1637, %v1605
      %v1655 = vsel %vm709, %v1639, %v1607
      %v1657 = vsel %vm709, %v1641, %v1609
      %v1659 = vsel %vm709, %v1643, %v1611
      %v1661 = vsel %vm709, %v1645, %v1613
      %s1662 = scalar_lea.vmem %s0, 16
      %v1663 = vld [vmem:[%s1662] sm:$0xf]
      %v1664 = vld [vmem:[%s1662 + $0x4] sm:$0xf]
      %v1667 = vunpack.c.l.b16 %v1663
      %v1668 = vunpack.c.l.b16 %v1664
      %v1669 = vpack.c.b16 %v1668, %v1667
      %v1671 = vsel %vm734, %v1647, 0
      %v1673 = vsel %vm734, %v1649, 0
      %v1675 = vsel %vm734, %v1651, 0
      %v1677 = vsel %vm734, %v1653, 0
      %v1679 = vsel %vm734, %v1655, 0
      %v1681 = vsel %vm734, %v1657, 0
      %v1683 = vsel %vm734, %v1659, 0
      %v1685 = vsel %vm734, %v1661, 0
      %1687 = vmatpush.bf16.msra.mxu0 0
      %1688 = vmatpush.bf16.msra.mxu0 0
      %1689 = vmatpush.bf16.msra.mxu0 0
      %1690 = vmatpush.bf16.msra.mxu0 0
      %1691 = vmatpush.bf16.msra.mxu0 0
      %1692 = vmatpush.bf16.msra.mxu0 0
      %1693 = vmatpush.bf16.msra.mxu0 0
      %1694 = vmatpush.bf16.msra.mxu0 %v1669
      %1695 = vmatmul.bf16.gmra.mxu0 %v1671
      %v1696 = vpop.f32.mrf.mxu0
      %v1697 = vadd.f32 0.0, %v1696
      %v1698 = vpop.f32.mrf.mxu0
      %v1699 = vadd.f32 0.0, %v1698
      %1700 = vmatmul.bf16.gmra.mxu0 %v1673
      %v1701 = vpop.f32.mrf.mxu0
      %v1702 = vadd.f32 0.0, %v1701
      %v1703 = vpop.f32.mrf.mxu0
      %v1704 = vadd.f32 0.0, %v1703
      %1705 = vmatmul.bf16.gmra.mxu0 %v1675
      %v1706 = vpop.f32.mrf.mxu0
      %v1707 = vadd.f32 0.0, %v1706
      %v1708 = vpop.f32.mrf.mxu0
      %v1709 = vadd.f32 0.0, %v1708
      %1710 = vmatmul.bf16.gmra.mxu0 %v1677
      %v1711 = vpop.f32.mrf.mxu0
      %v1712 = vadd.f32 0.0, %v1711
      %v1713 = vpop.f32.mrf.mxu0
      %v1714 = vadd.f32 0.0, %v1713
      %1715 = vmatmul.bf16.gmra.mxu0 %v1679
      %v1716 = vpop.f32.mrf.mxu0
      %v1717 = vadd.f32 0.0, %v1716
      %v1718 = vpop.f32.mrf.mxu0
      %v1719 = vadd.f32 0.0, %v1718
      %1720 = vmatmul.bf16.gmra.mxu0 %v1681
      %v1721 = vpop.f32.mrf.mxu0
      %v1722 = vadd.f32 0.0, %v1721
      %v1723 = vpop.f32.mrf.mxu0
      %v1724 = vadd.f32 0.0, %v1723
      %1725 = vmatmul.bf16.gmra.mxu0 %v1683
      %v1726 = vpop.f32.mrf.mxu0
      %v1727 = vadd.f32 0.0, %v1726
      %v1728 = vpop.f32.mrf.mxu0
      %v1729 = vadd.f32 0.0, %v1728
      %1730 = vmatmul.bf16.gmra.mxu0 %v1685
      %v1731 = vpop.f32.mrf.mxu0
      %v1732 = vadd.f32 0.0, %v1731
      %v1733 = vpop.f32.mrf.mxu0
      %v1734 = vadd.f32 0.0, %v1733
      %1735 = vdwg.mxu0
      %v1736 = vadd.f32 %v1697, %v801
      %v1737 = vadd.f32 %v1699, %v801
      %v1738 = vadd.f32 %v1702, %v801
      %v1739 = vadd.f32 %v1704, %v801
      %v1740 = vadd.f32 %v1707, %v801
      %v1741 = vadd.f32 %v1709, %v801
      %v1742 = vadd.f32 %v1712, %v801
      %v1743 = vadd.f32 %v1714, %v801
      %v1744 = vadd.f32 %v1717, %v801
      %v1745 = vadd.f32 %v1719, %v801
      %v1746 = vadd.f32 %v1722, %v801
      %v1747 = vadd.f32 %v1724, %v801
      %v1748 = vadd.f32 %v1727, %v801
      %v1749 = vadd.f32 %v1729, %v801
      %v1750 = vadd.f32 %v1732, %v801
      %v1751 = vadd.f32 %v1734, %v801
      %s1752 = scalar_lea.vmem %s194, 32
      %1753 = vst.msk [vmem:[%s1752] sm:$0xff] %vm675, %v1736
      %1754 = vst.msk [vmem:[%s1752 + $0x8] sm:$0xff] %vm675, %v1737
      %1755 = vst.msk [vmem:[%s1752 + $0x40] sm:$0xff] %vm675, %v1738
      %1756 = vst.msk [vmem:[%s1752 + $0x48] sm:$0xff] %vm675, %v1739
      %1757 = vst.msk [vmem:[%s1752 + $0x80] sm:$0xff] %vm675, %v1740
      %1758 = vst.msk [vmem:[%s1752 + $0x88] sm:$0xff] %vm675, %v1741
      %1759 = vst.msk [vmem:[%s1752 + $0xc0] sm:$0xff] %vm675, %v1742
      %1760 = vst.msk [vmem:[%s1752 + $0xc8] sm:$0xff] %vm675, %v1743
      %1761 = vst.msk [vmem:[%s1752 + $0x100] sm:$0xff] %vm675, %v1744
      %1762 = vst.msk [vmem:[%s1752 + $0x108] sm:$0xff] %vm675, %v1745
      %1763 = vst.msk [vmem:[%s1752 + $0x140] sm:$0xff] %vm675, %v1746
      %1764 = vst.msk [vmem:[%s1752 + $0x148] sm:$0xff] %vm675, %v1747
      %1765 = vst.msk [vmem:[%s1752 + $0x180] sm:$0xff] %vm675, %v1748
      %1766 = vst.msk [vmem:[%s1752 + $0x188] sm:$0xff] %vm675, %v1749
      %1767 = vst.msk [vmem:[%s1752 + $0x1c0] sm:$0xff] %vm675, %v1750
      %1768 = vst.msk [vmem:[%s1752 + $0x1c8] sm:$0xff] %vm675, %v1751
      %1769 = vrot.lane.b32.xlu0 %v1018, 4
      %v1770 = vpop.permute.xlu0 %1769
      %1771 = vrot.lane.b32.xlu0 %v1019, 4
      %v1772 = vpop.permute.xlu0 %1771
      %1773 = vrot.lane.b32.xlu0 %v1028, 4
      %v1774 = vpop.permute.xlu0 %1773
      %1775 = vrot.lane.b32.xlu0 %v1029, 4
      %v1776 = vpop.permute.xlu0 %1775
      %1777 = vrot.lane.b32.xlu0 %v1038, 4
      %v1778 = vpop.permute.xlu0 %1777
      %1779 = vrot.lane.b32.xlu0 %v1039, 4
      %v1780 = vpop.permute.xlu0 %1779
      %1781 = vrot.lane.b32.xlu0 %v1048, 4
      %v1782 = vpop.permute.xlu0 %1781
      %1783 = vrot.lane.b32.xlu0 %v1049, 4
      %v1784 = vpop.permute.xlu0 %1783
      %1785 = vrot.lane.b32.xlu0 %v1058, 4
      %v1786 = vpop.permute.xlu0 %1785
      %1787 = vrot.lane.b32.xlu0 %v1059, 4
      %v1788 = vpop.permute.xlu0 %1787
      %1789 = vrot.lane.b32.xlu0 %v1068, 4
      %v1790 = vpop.permute.xlu0 %1789
      %1791 = vrot.lane.b32.xlu0 %v1069, 4
      %v1792 = vpop.permute.xlu0 %1791
      %1793 = vrot.lane.b32.xlu0 %v1078, 4
      %v1794 = vpop.permute.xlu0 %1793
      %1795 = vrot.lane.b32.xlu0 %v1079, 4
      %v1796 = vpop.permute.xlu0 %1795
      %1797 = vrot.lane.b32.xlu0 %v1088, 4
      %v1798 = vpop.permute.xlu0 %1797
      %1799 = vrot.lane.b32.xlu0 %v1089, 4
      %v1800 = vpop.permute.xlu0 %1799
      %1801 = vrot.lane.b32.xlu0 %v1494, 8
      %v1802 = vpop.permute.xlu0 %1801
      %1803 = vrot.lane.b32.xlu0 %v1495, 8
      %v1804 = vpop.permute.xlu0 %1803
      %1805 = vrot.lane.b32.xlu0 %v1496, 8
      %v1806 = vpop.permute.xlu0 %1805
      %1807 = vrot.lane.b32.xlu0 %v1497, 8
      %v1808 = vpop.permute.xlu0 %1807
      %1809 = vrot.lane.b32.xlu0 %v1498, 8
      %v1810 = vpop.permute.xlu0 %1809
      %1811 = vrot.lane.b32.xlu0 %v1499, 8
      %v1812 = vpop.permute.xlu0 %1811
      %1813 = vrot.lane.b32.xlu0 %v1500, 8
      %v1814 = vpop.permute.xlu0 %1813
      %1815 = vrot.lane.b32.xlu0 %v1501, 8
      %v1816 = vpop.permute.xlu0 %1815
      %v1825 = vunpack.c.l.b16 %v297
      %v1826 = vunpack.c.l.b16 %v298
      %v1827 = vunpack.c.l.b16 %v299
      %v1828 = vunpack.c.l.b16 %v300
      %v1829 = vunpack.c.l.b16 %v301
      %v1830 = vunpack.c.l.b16 %v302
      %v1831 = vunpack.c.l.b16 %v303
      %v1832 = vunpack.c.l.b16 %v304
      %v1833 = vpack.c.b16 %v1439, %v1825
      %v1834 = vpack.c.b16 %v1441, %v1826
      %v1835 = vpack.c.b16 %v1443, %v1827
      %v1836 = vpack.c.b16 %v1445, %v1828
      %v1837 = vpack.c.b16 %v1447, %v1829
      %v1838 = vpack.c.b16 %v1449, %v1830
      %v1839 = vpack.c.b16 %v1451, %v1831
      %v1840 = vpack.c.b16 %v1453, %v1832
      %v1842 = vshrl.u32 %v1833, 16
      %v1844 = vshll.u32 %v1833, 16
      %v1846 = vrot.slane %v1844, 1
      %v1847 = vor.u32 %v1842, %v1846
      %v1848 = vsel %vm370, %v1847, %v1512
      %v1849 = vshrl.u32 %v1494, 16
      %v1852 = vshrl.u32 %v1834, 16
      %v1854 = vshll.u32 %v1834, 16
      %v1856 = vrot.slane %v1854, 1
      %v1857 = vor.u32 %v1852, %v1856
      %v1858 = vsel %vm370, %v1857, %v1524
      %v1859 = vshrl.u32 %v1495, 16
      %v1862 = vshrl.u32 %v1835, 16
      %v1864 = vshll.u32 %v1835, 16
      %v1866 = vrot.slane %v1864, 1
      %v1867 = vor.u32 %v1862, %v1866
      %v1868 = vsel %vm370, %v1867, %v1536
      %v1869 = vshrl.u32 %v1496, 16
      %v1872 = vshrl.u32 %v1836, 16
      %v1874 = vshll.u32 %v1836, 16
      %v1876 = vrot.slane %v1874, 1
      %v1877 = vor.u32 %v1872, %v1876
      %v1878 = vsel %vm370, %v1877, %v1548
      %v1879 = vshrl.u32 %v1497, 16
      %v1882 = vshrl.u32 %v1837, 16
      %v1884 = vshll.u32 %v1837, 16
      %v1886 = vrot.slane %v1884, 1
      %v1887 = vor.u32 %v1882, %v1886
      %v1888 = vsel %vm370, %v1887, %v1560
      %v1889 = vshrl.u32 %v1498, 16
      %v1892 = vshrl.u32 %v1838, 16
      %v1894 = vshll.u32 %v1838, 16
      %v1896 = vrot.slane %v1894, 1
      %v1897 = vor.u32 %v1892, %v1896
      %v1898 = vsel %vm370, %v1897, %v1572
      %v1899 = vshrl.u32 %v1499, 16
      %v1902 = vshrl.u32 %v1839, 16
      %v1904 = vshll.u32 %v1839, 16
      %v1906 = vrot.slane %v1904, 1
      %v1907 = vor.u32 %v1902, %v1906
      %v1908 = vsel %vm370, %v1907, %v1584
      %v1909 = vshrl.u32 %v1500, 16
      %v1912 = vshrl.u32 %v1840, 16
      %v1914 = vshll.u32 %v1840, 16
      %v1916 = vrot.slane %v1914, 1
      %v1917 = vor.u32 %v1912, %v1916
      %v1918 = vsel %vm370, %v1917, %v1596
      %v1919 = vshrl.u32 %v1501, 16
      %1921 = vrot.lane.b32.xlu0 %v1848, 12
      %v1922 = vpop.permute.xlu0 %1921
      %1923 = vrot.lane.b32.xlu0 %v1849, 12
      %v1924 = vpop.permute.xlu0 %1923
      %1925 = vrot.lane.b32.xlu0 %v1858, 12
      %v1926 = vpop.permute.xlu0 %1925
      %1927 = vrot.lane.b32.xlu0 %v1859, 12
      %v1928 = vpop.permute.xlu0 %1927
      %1929 = vrot.lane.b32.xlu0 %v1868, 12
      %v1930 = vpop.permute.xlu0 %1929
      %1931 = vrot.lane.b32.xlu0 %v1869, 12
      %v1932 = vpop.permute.xlu0 %1931
      %1933 = vrot.lane.b32.xlu0 %v1878, 12
      %v1934 = vpop.permute.xlu0 %1933
      %1935 = vrot.lane.b32.xlu0 %v1879, 12
      %v1936 = vpop.permute.xlu0 %1935
      %1937 = vrot.lane.b32.xlu0 %v1888, 12
      %v1938 = vpop.permute.xlu0 %1937
      %1939 = vrot.lane.b32.xlu0 %v1889, 12
      %v1940 = vpop.permute.xlu0 %1939
      %1941 = vrot.lane.b32.xlu0 %v1898, 12
      %v1942 = vpop.permute.xlu0 %1941
      %1943 = vrot.lane.b32.xlu0 %v1899, 12
      %v1944 = vpop.permute.xlu0 %1943
      %1945 = vrot.lane.b32.xlu0 %v1908, 12
      %v1946 = vpop.permute.xlu0 %1945
      %1947 = vrot.lane.b32.xlu0 %v1909, 12
      %v1948 = vpop.permute.xlu0 %1947
      %1949 = vrot.lane.b32.xlu0 %v1918, 12
      %v1950 = vpop.permute.xlu0 %1949
      %1951 = vrot.lane.b32.xlu0 %v1919, 12
      %v1952 = vpop.permute.xlu0 %1951
      %v1954 = vsel %vm675, %v515, %v1770
      %v1956 = vsel %vm675, %v555, %v1772
      %v1958 = vsel %vm675, %v516, %v1774
      %v1960 = vsel %vm675, %v556, %v1776
      %v1962 = vsel %vm675, %v517, %v1778
      %v1964 = vsel %vm675, %v557, %v1780
      %v1966 = vsel %vm675, %v518, %v1782
      %v1968 = vsel %vm675, %v558, %v1784
      %v1970 = vsel %vm675, %v519, %v1786
      %v1972 = vsel %vm675, %v559, %v1788
      %v1974 = vsel %vm675, %v520, %v1790
      %v1976 = vsel %vm675, %v560, %v1792
      %v1978 = vsel %vm675, %v521, %v1794
      %v1980 = vsel %vm675, %v561, %v1796
      %v1982 = vsel %vm675, %v522, %v1798
      %v1984 = vsel %vm675, %v562, %v1800
      %v1985 = vsel %vm692, %v1954, %v1463
      %v1987 = vsel %vm692, %v1956, %v1802
      %v1988 = vsel %vm692, %v1958, %v1465
      %v1990 = vsel %vm692, %v1960, %v1804
      %v1991 = vsel %vm692, %v1962, %v1467
      %v1993 = vsel %vm692, %v1964, %v1806
      %v1994 = vsel %vm692, %v1966, %v1469
      %v1996 = vsel %vm692, %v1968, %v1808
      %v1997 = vsel %vm692, %v1970, %v1471
      %v1999 = vsel %vm692, %v1972, %v1810
      %v2000 = vsel %vm692, %v1974, %v1473
      %v2002 = vsel %vm692, %v1976, %v1812
      %v2003 = vsel %vm692, %v1978, %v1475
      %v2005 = vsel %vm692, %v1980, %v1814
      %v2006 = vsel %vm692, %v1982, %v1477
      %v2008 = vsel %vm692, %v1984, %v1816
      %v2010 = vsel %vm709, %v1985, %v1922
      %v2012 = vsel %vm709, %v1987, %v1924
      %v2014 = vsel %vm709, %v1988, %v1926
      %v2016 = vsel %vm709, %v1990, %v1928
      %v2018 = vsel %vm709, %v1991, %v1930
      %v2020 = vsel %vm709, %v1993, %v1932
      %v2022 = vsel %vm709, %v1994, %v1934
      %v2024 = vsel %vm709, %v1996, %v1936
      %v2026 = vsel %vm709, %v1997, %v1938
      %v2028 = vsel %vm709, %v1999, %v1940
      %v2030 = vsel %vm709, %v2000, %v1942
      %v2032 = vsel %vm709, %v2002, %v1944
      %v2034 = vsel %vm709, %v2003, %v1946
      %v2036 = vsel %vm709, %v2005, %v1948
      %v2038 = vsel %vm709, %v2006, %v1950
      %v2040 = vsel %vm709, %v2008, %v1952
      %v2041 = vshrl.u32 %v2010, 16
      %v2043 = vshll.u32 %v2010, 16
      %v2045 = vrot.slane %v2043, 1
      %v2046 = vor.u32 %v2041, %v2045
      %v2047 = vshll.u32 %v2012, 16
      %v2049 = vrot.slane %v2047, 1
      %v2050 = vsel %vm370, %v2046, %v2049
      %v2051 = vshrl.u32 %v2014, 16
      %v2053 = vshll.u32 %v2014, 16
      %v2055 = vrot.slane %v2053, 1
      %v2056 = vor.u32 %v2051, %v2055
      %v2057 = vshll.u32 %v2016, 16
      %v2059 = vrot.slane %v2057, 1
      %v2060 = vsel %vm370, %v2056, %v2059
      %v2061 = vshrl.u32 %v2018, 16
      %v2063 = vshll.u32 %v2018, 16
      %v2065 = vrot.slane %v2063, 1
      %v2066 = vor.u32 %v2061, %v2065
      %v2067 = vshll.u32 %v2020, 16
      %v2069 = vrot.slane %v2067, 1
      %v2070 = vsel %vm370, %v2066, %v2069
      %v2071 = vshrl.u32 %v2022, 16
      %v2073 = vshll.u32 %v2022, 16
      %v2075 = vrot.slane %v2073, 1
      %v2076 = vor.u32 %v2071, %v2075
      %v2077 = vshll.u32 %v2024, 16
      %v2079 = vrot.slane %v2077, 1
      %v2080 = vsel %vm370, %v2076, %v2079
      %v2081 = vshrl.u32 %v2026, 16
      %v2083 = vshll.u32 %v2026, 16
      %v2085 = vrot.slane %v2083, 1
      %v2086 = vor.u32 %v2081, %v2085
      %v2087 = vshll.u32 %v2028, 16
      %v2089 = vrot.slane %v2087, 1
      %v2090 = vsel %vm370, %v2086, %v2089
      %v2091 = vshrl.u32 %v2030, 16
      %v2093 = vshll.u32 %v2030, 16
      %v2095 = vrot.slane %v2093, 1
      %v2096 = vor.u32 %v2091, %v2095
      %v2097 = vshll.u32 %v2032, 16
      %v2099 = vrot.slane %v2097, 1
      %v2100 = vsel %vm370, %v2096, %v2099
      %v2101 = vshrl.u32 %v2034, 16
      %v2103 = vshll.u32 %v2034, 16
      %v2105 = vrot.slane %v2103, 1
      %v2106 = vor.u32 %v2101, %v2105
      %v2107 = vshll.u32 %v2036, 16
      %v2109 = vrot.slane %v2107, 1
      %v2110 = vsel %vm370, %v2106, %v2109
      %v2111 = vshrl.u32 %v2038, 16
      %v2113 = vshll.u32 %v2038, 16
      %v2115 = vrot.slane %v2113, 1
      %v2116 = vor.u32 %v2111, %v2115
      %v2117 = vshll.u32 %v2040, 16
      %v2119 = vrot.slane %v2117, 1
      %v2120 = vsel %vm370, %v2116, %v2119
      %s2121 = scalar_lea.vmem %s0, 24
      %v2122 = vld [vmem:[%s2121] sm:$0xf]
      %v2123 = vld [vmem:[%s2121 + $0x4] sm:$0xf]
      %v2126 = vunpack.c.l.b16 %v2122
      %v2127 = vunpack.c.l.b16 %v2123
      %v2128 = vpack.c.b16 %v2127, %v2126
      %v2131 = vsel %vm734, %v2050, 0
      %v2134 = vsel %vm734, %v2060, 0
      %v2137 = vsel %vm734, %v2070, 0
      %v2140 = vsel %vm734, %v2080, 0
      %v2143 = vsel %vm734, %v2090, 0
      %v2146 = vsel %vm734, %v2100, 0
      %v2149 = vsel %vm734, %v2110, 0
      %v2152 = vsel %vm734, %v2120, 0
      %2154 = vmatpush.bf16.msra.mxu0 0
      %2155 = vmatpush.bf16.msra.mxu0 0
      %2156 = vmatpush.bf16.msra.mxu0 0
      %2157 = vmatpush.bf16.msra.mxu0 0
      %2158 = vmatpush.bf16.msra.mxu0 0
      %2159 = vmatpush.bf16.msra.mxu0 0
      %2160 = vmatpush.bf16.msra.mxu0 0
      %2161 = vmatpush.bf16.msra.mxu0 %v2128
      %2162 = vmatmul.bf16.gmra.mxu0 %v2131
      %v2163 = vpop.f32.mrf.mxu0
      %v2164 = vadd.f32 0.0, %v2163
      %v2165 = vpop.f32.mrf.mxu0
      %v2166 = vadd.f32 0.0, %v2165
      %2167 = vmatmul.bf16.gmra.mxu0 %v2134
      %v2168 = vpop.f32.mrf.mxu0
      %v2169 = vadd.f32 0.0, %v2168
      %v2170 = vpop.f32.mrf.mxu0
      %v2171 = vadd.f32 0.0, %v2170
      %2172 = vmatmul.bf16.gmra.mxu0 %v2137
      %v2173 = vpop.f32.mrf.mxu0
      %v2174 = vadd.f32 0.0, %v2173
      %v2175 = vpop.f32.mrf.mxu0
      %v2176 = vadd.f32 0.0, %v2175
      %2177 = vmatmul.bf16.gmra.mxu0 %v2140
      %v2178 = vpop.f32.mrf.mxu0
      %v2179 = vadd.f32 0.0, %v2178
      %v2180 = vpop.f32.mrf.mxu0
      %v2181 = vadd.f32 0.0, %v2180
      %2182 = vmatmul.bf16.gmra.mxu0 %v2143
      %v2183 = vpop.f32.mrf.mxu0
      %v2184 = vadd.f32 0.0, %v2183
      %v2185 = vpop.f32.mrf.mxu0
      %v2186 = vadd.f32 0.0, %v2185
      %2187 = vmatmul.bf16.gmra.mxu0 %v2146
      %v2188 = vpop.f32.mrf.mxu0
      %v2189 = vadd.f32 0.0, %v2188
      %v2190 = vpop.f32.mrf.mxu0
      %v2191 = vadd.f32 0.0, %v2190
      %2192 = vmatmul.bf16.gmra.mxu0 %v2149
      %v2193 = vpop.f32.mrf.mxu0
      %v2194 = vadd.f32 0.0, %v2193
      %v2195 = vpop.f32.mrf.mxu0
      %v2196 = vadd.f32 0.0, %v2195
      %2197 = vmatmul.bf16.gmra.mxu0 %v2152
      %v2198 = vpop.f32.mrf.mxu0
      %v2199 = vadd.f32 0.0, %v2198
      %v2200 = vpop.f32.mrf.mxu0
      %v2201 = vadd.f32 0.0, %v2200
      %2202 = vdwg.mxu0
      %v2203 = vadd.f32 %v2164, %v801
      %v2204 = vadd.f32 %v2166, %v801
      %v2205 = vadd.f32 %v2169, %v801
      %v2206 = vadd.f32 %v2171, %v801
      %v2207 = vadd.f32 %v2174, %v801
      %v2208 = vadd.f32 %v2176, %v801
      %v2209 = vadd.f32 %v2179, %v801
      %v2210 = vadd.f32 %v2181, %v801
      %v2211 = vadd.f32 %v2184, %v801
      %v2212 = vadd.f32 %v2186, %v801
      %v2213 = vadd.f32 %v2189, %v801
      %v2214 = vadd.f32 %v2191, %v801
      %v2215 = vadd.f32 %v2194, %v801
      %v2216 = vadd.f32 %v2196, %v801
      %v2217 = vadd.f32 %v2199, %v801
      %v2218 = vadd.f32 %v2201, %v801
      %s2219 = scalar_lea.vmem %s194, 48
      %2220 = vst.msk [vmem:[%s2219] sm:$0xff] %vm675, %v2203
      %2221 = vst.msk [vmem:[%s2219 + $0x8] sm:$0xff] %vm675, %v2204
      %2222 = vst.msk [vmem:[%s2219 + $0x40] sm:$0xff] %vm675, %v2205
      %2223 = vst.msk [vmem:[%s2219 + $0x48] sm:$0xff] %vm675, %v2206
      %2224 = vst.msk [vmem:[%s2219 + $0x80] sm:$0xff] %vm675, %v2207
      %2225 = vst.msk [vmem:[%s2219 + $0x88] sm:$0xff] %vm675, %v2208
      %2226 = vst.msk [vmem:[%s2219 + $0xc0] sm:$0xff] %vm675, %v2209
      %2227 = vst.msk [vmem:[%s2219 + $0xc8] sm:$0xff] %vm675, %v2210
      %2228 = vst.msk [vmem:[%s2219 + $0x100] sm:$0xff] %vm675, %v2211
      %2229 = vst.msk [vmem:[%s2219 + $0x108] sm:$0xff] %vm675, %v2212
      %2230 = vst.msk [vmem:[%s2219 + $0x140] sm:$0xff] %vm675, %v2213
      %2231 = vst.msk [vmem:[%s2219 + $0x148] sm:$0xff] %vm675, %v2214
      %2232 = vst.msk [vmem:[%s2219 + $0x180] sm:$0xff] %vm675, %v2215
      %2233 = vst.msk [vmem:[%s2219 + $0x188] sm:$0xff] %vm675, %v2216
      %2234 = vst.msk [vmem:[%s2219 + $0x1c0] sm:$0xff] %vm675, %v2217
      %2235 = vst.msk [vmem:[%s2219 + $0x1c8] sm:$0xff] %vm675, %v2218
      %s2236 = smul.u32 8, %s19
      %p2237 = scmp.lt.s32.totalorder %s18, 1
      %s2238 = scalar_select %p2237, %s18, 1
      %p2239 = scmp.lt.s32.totalorder %s2236, 15
      %s2240 = scalar_select %p2239, %s2236, 15
      %s2241 = smul.addr %s2240, 8
      %s2242 = smul.addr %s2238, 128
      %s2243 = sadd.s32 %s2241, %s2242
      %s2244 = smul.addr %s2243, 8
      %s2245 = scalar_lea.vmem %s3, %s2244
      // Predicated region
      $region33: #{tpu_custom_call.1} parent=31 // pred_check
        %p2246 = pneg %p114
      $region34: #{tpu_custom_call.1} parent=31 // pred_check_branch
        %2248 = sbr.rel (%p2246) target = $region36
      $region35: #{tpu_custom_call.1} parent=31 // pred_region
        %s2249 = smul.u32 8, %s19
      $region36: #{tpu_custom_call.1} parent=31 // pred_fallthru
        _
    $region32: #{tpu_custom_call.1} parent=5 // pred_fallthru
      _
    %p2250 = scmp.le.s32.totalorder 2, %s9
    // Predicated region
    $region37: #{tpu_custom_call.1} parent=5 // pred_check
      %p2251 = pneg %p2250
    $region38: #{tpu_custom_call.1} parent=5 // pred_check_branch
      %2253 = sbr.rel (%p2251) target = $region40
    $region39: #{tpu_custom_call.1} parent=5 // pred_region
      %s2254 = ssub.s32 %s9, 2
      // Predicated region
      $region41: #{tpu_custom_call.1} parent=39 // pred_check
        %p2255 = pneg %p120
      $region42: #{tpu_custom_call.1} parent=39 // pred_check_branch
        %2257 = sbr.rel (%p2255) target = $region44
      $region43: #{tpu_custom_call.1} parent=39 // pred_region
        %s2258 = smul.u32 8, %s21
        %p2259 = scmp.lt.s32.totalorder %s20, 1
        %s2260 = scalar_select %p2259, %s20, 1
        %p2261 = scmp.lt.s32.totalorder %s2258, 15
        %s2262 = scalar_select %p2261, %s2258, 15
        %s2263 = smul.addr %s2262, 8
        %s2264 = smul.addr %s2260, 128
        %s2265 = sadd.s32 %s2263, %s2264
        %s2266 = smul.addr %s2265, 8
        %s2267 = scalar_lea.vmem %s3, %s2266
      $region44: #{tpu_custom_call.1} parent=39 // pred_fallthru
        _
    $region40: #{tpu_custom_call.1} parent=5 // pred_fallthru
      _
  $region6: #{tpu_custom_call.1} parent=0 // loop_footer
    %s13 = sadd.s32 1, %s9
  $region7: #{tpu_custom_call.1} parent=0 // loop_footer_branch
    %8 = sbr.rel target = $region3
  $region8: #{tpu_custom_call.1} parent=0 // loop_exit
    _

</llo_original>
